<compile_context>
chip_gen: v7x
topology: tpu7x:2x2x1
jax: 0.10.0
libtpu: 0.0.40
codegen_flags: <defaults>
</compile_context>

<pallas_src>
import jax
import jax.numpy as jnp
from jax import lax
from jax.experimental import pallas as pl
from jax.experimental.pallas import tpu as pltpu


def _round_up(x, m):
    return ((x + m - 1) // m) * m


def _linear_bias_kernel(x_ref, w_ref, b_ref, o_ref, acc_ref):
    # x_ref: (tm, tk), w_ref: (tn, tk) [native torch layout], b_ref: (1, tn) f32,
    # o_ref: (tm, tn), acc_ref: (tm, tn) f32 scratch.
    k = pl.program_id(2)

    @pl.when(k == 0)
    def _():
        acc_ref[...] = jnp.zeros_like(acc_ref)

    # x @ W^T : contract the last dim of both operands (MXU handles trans_b).
    acc_ref[...] += lax.dot_general(
        x_ref[...], w_ref[...],
        dimension_numbers=(((1,), (1,)), ((), ())),
        preferred_element_type=jnp.float32)

    @pl.when(k == pl.num_programs(2) - 1)
    def _():
        o_ref[...] = (acc_ref[...] + b_ref[...]).astype(o_ref.dtype)


def _linear_nobias_kernel(x_ref, w_ref, o_ref, acc_ref):
    k = pl.program_id(2)

    @pl.when(k == 0)
    def _():
        acc_ref[...] = jnp.zeros_like(acc_ref)

    acc_ref[...] += lax.dot_general(
        x_ref[...], w_ref[...],
        dimension_numbers=(((1,), (1,)), ((), ())),
        preferred_element_type=jnp.float32)

    @pl.when(k == pl.num_programs(2) - 1)
    def _():
        o_ref[...] = acc_ref[...].astype(o_ref.dtype)


def _pallas_linear(x2d, weight, bias, compute_dtype):
    """Tiled Pallas matmul: y = x2d @ weight.T (+ bias). weight: [out, in]."""
    B, K = x2d.shape
    N = weight.shape[0]
    out_dtype = x2d.dtype

    # Tile sizes safe for the most VMEM-constrained generation (v7x, 64 MiB
    # physical / 32 MiB scoped): bf16 tiles + f32 acc + double buffering ~2 MiB.
    tm = min(256, _round_up(B, 8))
    tn = min(256, _round_up(N, 128))
    tk = min(512, _round_up(K, 128))

    Bp = _round_up(B, tm)
    Np = _round_up(N, tn)
    Kp = _round_up(K, tk)

    xe = x2d.astype(compute_dtype)
    we = weight.astype(compute_dtype)
    if (Bp, Kp) != (B, K):
        xe = jnp.pad(xe, ((0, Bp - B), (0, Kp - K)))
    if (Np, Kp) != (N, K):
        we = jnp.pad(we, ((0, Np - N), (0, Kp - K)))

    grid = (Bp // tm, Np // tn, Kp // tk)  # reduction axis last

    x_spec = pl.BlockSpec((tm, tk), lambda i, j, k: (i, k))
    w_spec = pl.BlockSpec((tn, tk), lambda i, j, k: (j, k))
    o_spec = pl.BlockSpec((tm, tn), lambda i, j, k: (i, j))

    common = dict(
        out_shape=jax.ShapeDtypeStruct((Bp, Np), out_dtype),
        compiler_params=pltpu.CompilerParams(
            dimension_semantics=("parallel", "parallel", "arbitrary"),
            vmem_limit_bytes=32 * 1024 * 1024,
        ),
    )

    if bias is not None:
        be = bias.astype(jnp.float32).reshape(1, N)
        if Np != N:
            be = jnp.pad(be, ((0, 0), (0, Np - N)))
        b_spec = pl.BlockSpec((1, tn), lambda i, j, k: (0, j))
        y = pl.pallas_call(
            _linear_bias_kernel,
            grid_spec=pltpu.PrefetchScalarGridSpec(
                num_scalar_prefetch=0,
                grid=grid,
                in_specs=[x_spec, w_spec, b_spec],
                out_specs=o_spec,
                scratch_shapes=[pltpu.VMEM((tm, tn), jnp.float32)],
            ),
            **common,
        )(xe, we, be)
    else:
        y = pl.pallas_call(
            _linear_nobias_kernel,
            grid_spec=pltpu.PrefetchScalarGridSpec(
                num_scalar_prefetch=0,
                grid=grid,
                in_specs=[x_spec, w_spec],
                out_specs=o_spec,
                scratch_shapes=[pltpu.VMEM((tm, tn), jnp.float32)],
            ),
            **common,
        )(xe, we)

    return y[:B, :N]


def random_linear_forward(x, weight, bias=None, *,
                          compute_dtype=jnp.bfloat16, force_pallas=False):
    """y = x @ weight.T (+ bias). weight: [out, in] like torch."""
    if x.ndim == 0:
        # mirrors torch's `x.expand(1, 1)` (only valid when in_features == 1)
        x = jnp.broadcast_to(x, (1, 1))
    in_features = weight.shape[1]
    out_features = weight.shape[0]
    orig_shape = x.shape
    x2d = x.reshape(-1, in_features)
    B = x2d.shape[0]

    # Size-based dispatch: Pallas launch/grid overhead dwarfs tiny matmuls.
    use_pallas = force_pallas or (
        B >= 64 and out_features >= 128 and in_features >= 128)

    if use_pallas:
        y = _pallas_linear(x2d, weight, bias, compute_dtype)
    else:
        y = x2d @ weight.T
        if bias is not None:
            y = y + bias[None, :]

    return y.reshape(orig_shape[:-1] + (out_features,))


def sparsify(key, tensor, density):
    """tensor * (uniform(0,1) <= density), matching the torch helper."""
    if density is None:
        return tensor
    mask = (jax.random.uniform(key, tensor.shape) <= density).astype(tensor.dtype)
    return tensor * mask


def make_random_linear_params(key, in_features, out_features, bias=True,
                              weight_scale=1.0, bias_scale=1.0, density=None):
    """Deterministic parameter init mirroring RandomLinear.__init__."""
    kw, kwm, kb, kbm = jax.random.split(key, 4)
    w = jax.random.uniform(kw, (out_features, in_features),
                           minval=-weight_scale, maxval=weight_scale)
    w = sparsify(kwm, w, density)
    # TODO(synk): spectral_radius rescaling (eig/svd) is host-side init work,
    # not part of the forward hot path; left out of the kernel.
    if bias:
        b = jax.random.uniform(kb, (out_features,),
                               minval=-bias_scale, maxval=bias_scale)
        b = sparsify(kbm, b, density)
    else:
        b = None
    return w, b


if __name__ == "__main__":
    key = jax.random.PRNGKey(0)
    k_params, k_x, k_xs = jax.random.split(key, 3)

    # --- main run: shape that exercises the tiled Pallas path (2x2x2 grid,
    #     with N padding 384 -> 512) ---
    batch, in_features, out_features = 512, 1024, 384
    weight, bias = make_random_linear_params(
        k_params, in_features, out_features, bias=True,
        weight_scale=1.0, bias_scale=0.5, density=0.5)
    x = jax.random.normal(k_x, (batch, in_features), dtype=jnp.float32)

    y = random_linear_forward(x, weight, bias)
    jax.block_until_ready(y)

    # reference with the same bf16-input / f32-accumulate arithmetic
    y_ref = jnp.dot(x.astype(jnp.bfloat16), weight.astype(jnp.bfloat16).T,
                    preferred_element_type=jnp.float32) + bias[None, :]
    assert y.shape == (batch, out_features)
    assert jnp.allclose(y, y_ref, atol=1e-2, rtol=1e-2)

    # --- small, oddly-sized shape forced through the Pallas path to validate
    #     the padding / alignment handling ---
    batch_s, in_s, out_s = 8, 32, 16
    w_s, b_s = make_random_linear_params(
        jax.random.PRNGKey(1), in_s, out_s, bias=True,
        weight_scale=1.0, bias_scale=0.5, density=0.5)
    x_s = jax.random.normal(k_xs, (batch_s, in_s), dtype=jnp.float32)
    y_s = random_linear_forward(x_s, w_s, b_s, force_pallas=True)
    jax.block_until_ready(y_s)
    y_s_ref = jnp.dot(x_s.astype(jnp.bfloat16), w_s.astype(jnp.bfloat16).T,
                      preferred_element_type=jnp.float32) + b_s[None, :]
    assert jnp.allclose(y_s, y_s_ref, atol=1e-2, rtol=1e-2)

    # --- tiny-problem fallback (plain XLA path) sanity check ---
    y_f = random_linear_forward(x_s, w_s, b_s)
    jax.block_until_ready(y_f)
    assert jnp.allclose(y_f, x_s @ w_s.T + b_s, atol=1e-5, rtol=1e-5)

    print("KERNEL_OK")
</pallas_src>

<mosaic_0001>
module attributes {stable_mosaic.version = 11 : i64} {
  func.func @_linear_bias_kernel(%arg0: i32, %arg1: i32, %arg2: i32, %arg3: memref<256x512xbf16, #tpu.memory_space<vmem>>, %arg4: memref<256x512xbf16, #tpu.memory_space<vmem>>, %arg5: memref<1x256xf32, #tpu.memory_space<vmem>>, %arg6: memref<256x256xf32, #tpu.memory_space<vmem>>, %arg7: memref<256x256xf32, #tpu.memory_space<vmem>>) attributes {dimension_semantics = [#tpu.dimension_semantics<parallel>, #tpu.dimension_semantics<parallel>, #tpu.dimension_semantics<arbitrary>], iteration_bounds = array<i64: 2, 2, 2>, scalar_prefetch = 0 : i64, scratch_operands = 1 : i64, tpu.core_type = #tpu.core_type<tc>, window_params = [{transform_indices = @transform_0, window_bounds = array<i64: 256, 512>}, {transform_indices = @transform_1, window_bounds = array<i64: 256, 512>}, {transform_indices = @transform_2, window_bounds = array<i64: 1, 256>}, {transform_indices = @transform_3, window_bounds = array<i64: 256, 256>}]} {
    %c0_i32 = arith.constant 0 : i32
    %0 = arith.cmpi eq, %arg2, %c0_i32 : i32
    %1 = arith.extui %0 : i1 to i32
    %c0_i32_0 = arith.constant 0 : i32
    %2 = arith.cmpi ne, %1, %c0_i32_0 : i32
    scf.if %2 {
      %cst_9 = arith.constant 0.000000e+00 : f32
      %12 = vector.broadcast %cst_9 : f32 to vector<256x256xf32>
      %c0_10 = arith.constant 0 : index
      %c0_11 = arith.constant 0 : index
      %13 = vector.load %arg7[%c0_10, %c0_11] : memref<256x256xf32, #tpu.memory_space<vmem>>, vector<256x256xf32>
      tpu.vector_store %arg7[%c0_10, %c0_11], %12 {strides = array<i32>} : memref<256x256xf32, #tpu.memory_space<vmem>>, vector<256x256xf32>,
    } else {
    }
    %c0 = arith.constant 0 : index
    %c0_1 = arith.constant 0 : index
    %3 = vector.load %arg7[%c0, %c0_1] : memref<256x256xf32, #tpu.memory_space<vmem>>, vector<256x256xf32>
    %c0_2 = arith.constant 0 : index
    %c0_3 = arith.constant 0 : index
    %4 = vector.load %arg3[%c0_2, %c0_3] : memref<256x512xbf16, #tpu.memory_space<vmem>>, vector<256x512xbf16>
    %c0_4 = arith.constant 0 : index
    %c0_5 = arith.constant 0 : index
    %5 = vector.load %arg4[%c0_4, %c0_5] : memref<256x512xbf16, #tpu.memory_space<vmem>>, vector<256x512xbf16>
    %cst = arith.constant dense<0.000000e+00> : vector<256x256xf32>
    %6 = tpu.matmul %4, %5, %cst {dimension_numbers = #tpu.dot_dimension_numbers<[1], [1], [0], [0], [0, 0, 1, 0], [], []>} : vector<256x512xbf16>, vector<256x512xbf16>, vector<256x256xf32> -> vector<256x256xf32>
    %7 = arith.addf %3, %6 : vector<256x256xf32>
    %c0_6 = arith.constant 0 : index
    %c0_7 = arith.constant 0 : index
    %8 = vector.load %arg7[%c0_6, %c0_7] : memref<256x256xf32, #tpu.memory_space<vmem>>, vector<256x256xf32>
    tpu.vector_store %arg7[%c0_6, %c0_7], %7 {strides = array<i32>} : memref<256x256xf32, #tpu.memory_space<vmem>>, vector<256x256xf32>,
    %c1_i32 = arith.constant 1 : i32
    %9 = arith.cmpi eq, %arg2, %c1_i32 : i32
    %10 = arith.extui %9 : i1 to i32
    %c0_i32_8 = arith.constant 0 : i32
    %11 = arith.cmpi ne, %10, %c0_i32_8 : i32
    scf.if %11 {
      %c0_9 = arith.constant 0 : index
      %c0_10 = arith.constant 0 : index
      %12 = vector.load %arg7[%c0_9, %c0_10] : memref<256x256xf32, #tpu.memory_space<vmem>>, vector<256x256xf32>
      %c0_11 = arith.constant 0 : index
      %c0_12 = arith.constant 0 : index
      %13 = vector.load %arg5[%c0_11, %c0_12] : memref<1x256xf32, #tpu.memory_space<vmem>>, vector<1x256xf32>
      %14 = vector.broadcast %13 : vector<1x256xf32> to vector<256x256xf32>
      %15 = arith.addf %12, %14 : vector<256x256xf32>
      %c0_13 = arith.constant 0 : index
      %c0_14 = arith.constant 0 : index
      %16 = vector.load %arg6[%c0_13, %c0_14] : memref<256x256xf32, #tpu.memory_space<vmem>>, vector<256x256xf32>
      tpu.vector_store %arg6[%c0_13, %c0_14], %15 {strides = array<i32>} : memref<256x256xf32, #tpu.memory_space<vmem>>, vector<256x256xf32>,
    } else {
    }
    return
  }
  func.func @transform_0(%arg0: i32, %arg1: i32, %arg2: i32) -> (i32, i32) {
    %c0_i32 = arith.constant 0 : i32
    return %arg0, %arg2 : i32, i32
  }
  func.func @transform_1(%arg0: i32, %arg1: i32, %arg2: i32) -> (i32, i32) {
    %c0_i32 = arith.constant 0 : i32
    return %arg1, %arg2 : i32, i32
  }
  func.func @transform_2(%arg0: i32, %arg1: i32, %arg2: i32) -> (i32, i32) {
    %c0_i32 = arith.constant 0 : i32
    %c0_i32_0 = arith.constant 0 : i32
    return %c0_i32, %arg1 : i32, i32
  }
  func.func @transform_3(%arg0: i32, %arg1: i32, %arg2: i32) -> (i32, i32) {
    %c0_i32 = arith.constant 0 : i32
    return %arg0, %arg1 : i32, i32
  }
}

</mosaic_0001>

<llo_original>
// kernel: tpu_custom_call.1
$region0: #{tpu_custom_call.1}
  #allocation0 [shape = 'u32[]', space=smem, size = 0x4, offset = 0x4, fixed_abs, tag = 'smem constant byte address 0x4 - core index']
  #allocation1 [shape = 'u32[144,128]{1,0:T(1,128)}', space=vmem, size = 0x12000, scoped, tag = 'internal scratch']
  #allocation2 [shape = 'f32[256,256]{1,0:T(8,128)}', space=vmem, size = 0x40000, scoped, tag = 'scratch operand']
  %s0 = inlined_call_operand.hbm [shape: bf16[512,1024], index: 0, kind: input, shape index: {}]
  %s1 = inlined_call_operand.hbm [shape: bf16[512,1024], index: 1, kind: input, shape index: {}]
  %s2 = inlined_call_operand.vmem [shape: f32[1,512], index: 2, kind: input, shape index: {}]
  %s3 = inlined_call_operand.hbm [shape: f32[512,512], index: 3, kind: output, shape index: {}]
  %s4 = sld [smem:[#allocation0]]
  $region61: #{tpu_custom_call.1} parent=0
    _
  %s6 = ssub.s32 1, %s4
  %s7 = scalar_select 0, %s6, %s4
  $region1: #{tpu_custom_call.1} parent=0
    #allocation3 [shape = 'u8[524288]{0}', space=vmem, size = 0x80000, scoped, tag = 'input window, operand 0']
    #allocation4 [shape = 's32[2]{0}', space=sflag, size = 0x8, scoped, tag = 'scoped memory for tpu_custom_call.1']
    #allocation5 [shape = 's32[2]{0}', space=sflag, size = 0x8, scoped, tag = 'scoped memory for tpu_custom_call.1']
    #allocation6 [shape = 'u8[524288]{0}', space=vmem, size = 0x80000, scoped, tag = 'input window, operand 1']
    #allocation7 [shape = 's32[2]{0}', space=sflag, size = 0x8, scoped, tag = 'scoped memory for tpu_custom_call.1']
    #allocation8 [shape = 'u8[524288]{0}', space=vmem, size = 0x80000, scoped, tag = 'output window, operand 0']
    %8 = vsyncpa [#allocation4], 0
    %s9 = scalar_lea.sflag [#allocation4], 1
    %10 = vsyncpa %s9, 0
    %11 = vsyncpa [#allocation7], 0
    %s12 = scalar_lea.sflag [#allocation7], 1
    %13 = vsyncpa %s12, 0
    %14 = vsyncpa [#allocation5], 0
    %s15 = scalar_lea.sflag [#allocation5], 1
    %16 = vsyncpa %s15, 0
    loop: start=0, step=1, limit=10
    $region2: #{tpu_custom_call.1} parent=1 // loop_pre_header
      _
    $region3: #{tpu_custom_call.1} parent=1 // loop_header
      %s18 = sphi 0, %s22
      %p19 = scmp.ge.s32.totalorder %s18, 10
      %s25 = sphi 0, %s44
      %s26 = sphi 0, %s40
      %s27 = sphi 0, %s36
      %s28 = sphi 0, %s25
      %s29 = sphi 0, %s26
      %s30 = sphi 0, %s27
      %s31 = sphi 0, %s28
      %s32 = sphi 0, %s29
      %s33 = sphi 0, %s30
      %s49 = sphi 0, %s51
      %s52 = sphi 0, %s49
      %s53 = sphi 0, %s52
      %s69 = sphi 0, %s53
      %s77 = sphi 0, %s79
      %s80 = sphi 0, %s77
      %s81 = sphi 0, %s80
      %s97 = sphi 0, %s81
      %s103 = sphi 0, %s105
      %s106 = sphi 0, %s103
      %s107 = sphi 0, %s106
      %s123 = sphi 0, %s107
      %s131 = sphi 0, %s133
      %s134 = sphi 0, %s131
      %s135 = sphi 0, %s134
      %s151 = sphi 0, %s135
    $region4: #{tpu_custom_call.1} parent=1 // loop_header_branch
      %21 = sbr.rel (%p19) target = $region8
    $region5: #{tpu_custom_call.1} parent=1 // loop_body
      %s23 = ssub.s32 %s18, 1
      %s24 = ssub.s32 %s18, 2
      %s34 = sadd.s32 1, %s27
      %p35 = scmp.ge.s32.totalorder %s34, 2
      %s36 = scalar_select %p35, 0, %s34
      %s37 = sadd.s32 1, %s26
      %s38 = scalar_select %p35, %s37, %s26
      %p39 = scmp.ge.s32.totalorder %s38, 2
      %s40 = scalar_select %p39, 0, %s38
      %s41 = sadd.s32 1, %s25
      %s42 = scalar_select %p39, %s41, %s25
      %p43 = scmp.ge.s32.totalorder %s42, 2
      %s44 = scalar_select %p43, 0, %s42
      %s45 = ssub.s32 %s25, %s44
      %s46 = ssub.s32 %s27, %s36
      %s47 = sor.u32 %s45, %s46
      %p48 = scmp.eq.s32.totalorder %s47, 0
      %s50 = sadd.s32 %s49, 1
      %s51 = scalar_select %p48, %s49, %s50
      %p54 = pneg %p48
      %p55 = scmp.eq.s32.totalorder %s18, 7
      %p56 = por %p54, %p55
      %p57 = scmp.ne.s32.totalorder %s49, %s52
      %p58 = scmp.eq.s32.totalorder %s18, 0
      %p59 = por %p57, %p58
      %p60 = scmp.ne.s32.totalorder %s49, %s52
      %p61 = scmp.eq.s32.totalorder %s23, 7
      %p62 = por %p60, %p61
      %p63 = scmp.ne.s32.totalorder %s52, %s53
      %p64 = scmp.eq.s32.totalorder %s23, 0
      %p65 = por %p63, %p64
      %p66 = scmp.ne.s32.totalorder %s52, %s53
      %p67 = scmp.eq.s32.totalorder %s24, 7
      %p68 = por %p66, %p67
      %p70 = scmp.ne.s32.totalorder %s53, %s69
      %p71 = scmp.eq.s32.totalorder %s24, 0
      %p72 = por %p70, %p71
      %s73 = ssub.s32 %s26, %s40
      %s74 = ssub.s32 %s27, %s36
      %s75 = sor.u32 %s73, %s74
      %p76 = scmp.eq.s32.totalorder %s75, 0
      %s78 = sadd.s32 %s77, 1
      %s79 = scalar_select %p76, %s77, %s78
      %p82 = pneg %p76
      %p83 = scmp.eq.s32.totalorder %s18, 7
      %p84 = por %p82, %p83
      %p85 = scmp.ne.s32.totalorder %s77, %s80
      %p86 = scmp.eq.s32.totalorder %s18, 0
      %p87 = por %p85, %p86
      %p88 = scmp.ne.s32.totalorder %s77, %s80
      %p89 = scmp.eq.s32.totalorder %s23, 7
      %p90 = por %p88, %p89
      %p91 = scmp.ne.s32.totalorder %s80, %s81
      %p92 = scmp.eq.s32.totalorder %s23, 0
      %p93 = por %p91, %p92
      %p94 = scmp.ne.s32.totalorder %s80, %s81
      %p95 = scmp.eq.s32.totalorder %s24, 7
      %p96 = por %p94, %p95
      %p98 = scmp.ne.s32.totalorder %s81, %s97
      %p99 = scmp.eq.s32.totalorder %s24, 0
      %p100 = por %p98, %p99
      %s101 = ssub.s32 %s26, %s40
      %p102 = scmp.eq.s32.totalorder %s101, 0
      %s104 = sadd.s32 %s103, 1
      %s105 = scalar_select %p102, %s103, %s104
      %p108 = pneg %p102
      %p109 = scmp.eq.s32.totalorder %s18, 7
      %p110 = por %p108, %p109
      %p111 = scmp.ne.s32.totalorder %s103, %s106
      %p112 = scmp.eq.s32.totalorder %s18, 0
      %p113 = por %p111, %p112
      %p114 = scmp.ne.s32.totalorder %s103, %s106
      %p115 = scmp.eq.s32.totalorder %s23, 7
      %p116 = por %p114, %p115
      %p117 = scmp.ne.s32.totalorder %s106, %s107
      %p118 = scmp.eq.s32.totalorder %s23, 0
      %p119 = por %p117, %p118
      %p120 = scmp.ne.s32.totalorder %s106, %s107
      %p121 = scmp.eq.s32.totalorder %s24, 7
      %p122 = por %p120, %p121
      %p124 = scmp.ne.s32.totalorder %s107, %s123
      %p125 = scmp.eq.s32.totalorder %s24, 0
      %p126 = por %p124, %p125
      %s127 = ssub.s32 %s25, %s44
      %s128 = ssub.s32 %s26, %s40
      %s129 = sor.u32 %s127, %s128
      %p130 = scmp.eq.s32.totalorder %s129, 0
      %s132 = sadd.s32 %s131, 1
      %s133 = scalar_select %p130, %s131, %s132
      %p136 = pneg %p130
      %p137 = scmp.eq.s32.totalorder %s18, 7
      %p138 = por %p136, %p137
      %p139 = scmp.ne.s32.totalorder %s131, %s134
      %p140 = scmp.eq.s32.totalorder %s18, 0
      %p141 = por %p139, %p140
      %p142 = scmp.ne.s32.totalorder %s131, %s134
      %p143 = scmp.eq.s32.totalorder %s23, 7
      %p144 = por %p142, %p143
      %p145 = scmp.ne.s32.totalorder %s134, %s135
      %p146 = scmp.eq.s32.totalorder %s23, 0
      %p147 = por %p145, %p146
      %p148 = scmp.ne.s32.totalorder %s134, %s135
      %p149 = scmp.eq.s32.totalorder %s24, 7
      %p150 = por %p148, %p149
      %p152 = scmp.ne.s32.totalorder %s135, %s151
      %p153 = scmp.eq.s32.totalorder %s24, 0
      %p154 = por %p152, %p153
      %p155 = scmp.le.s32.totalorder 1, %s18
      %p156 = scmp.lt.s32.totalorder %s18, 9
      %p157 = pnand %p155, %p156
      %p158 = pneg %p157
      // Predicated region
      $region9: #{tpu_custom_call.1} parent=5 // pred_check
        _
      $region10: #{tpu_custom_call.1} parent=5 // pred_check_branch
        %160 = sbr.rel (%p157) target = $region12
      $region11: #{tpu_custom_call.1} parent=5 // pred_region
        %s161 = ssub.s32 %s18, 1
      $region12: #{tpu_custom_call.1} parent=5 // pred_fallthru
        _
      %p162 = scmp.lt.s32.totalorder %s18, 8
      // Predicated region
      $region13: #{tpu_custom_call.1} parent=5 // pred_check
        %p163 = pneg %p162
      $region14: #{tpu_custom_call.1} parent=5 // pred_check_branch
        %165 = sbr.rel (%p163) target = $region16
      $region15: #{tpu_custom_call.1} parent=5 // pred_region
        // Predicated region
        $region17: #{tpu_custom_call.1} parent=15 // pred_check
          %p166 = pneg %p59
        $region18: #{tpu_custom_call.1} parent=15 // pred_check_branch
          %168 = sbr.rel (%p166) target = $region20
        $region19: #{tpu_custom_call.1} parent=15 // pred_region
          %s169 = sand.u32 %s49, 1
          %s170 = scalar_lea.sflag [#allocation4], %s169
          %s171 = sand.u32 %s49, 1
          %s172 = smul.addr %s171, 512
          %s173 = scalar_lea.vmem [#allocation3], %s172
          %s174 = smul.u32 32, %s25
          %s175 = smul.u32 4, %s27
          %s177 = ssub.s32 8192, 8192
          %178 = vsyncadd %s170, %s177
          %s179 = smul.addr %s174, 8
          %s180 = sadd.s32 %s175, %s179
          %s181 = smul.addr %s180, 64
          %s182 = scalar_lea.hbm %s0, %s181
          %s183 = sshll.u32 %s173, 4
          %s184 = int_to_ptr.vmem [resolvable:$true] %s183
          %189 = dma.hbm_to_vmem [thread:$0]  %s182, 8192, %s184, %s170, 512, 256, 16
        $region20: #{tpu_custom_call.1} parent=15 // pred_fallthru
          _
        // Predicated region
        $region21: #{tpu_custom_call.1} parent=15 // pred_check
          %p190 = pneg %p87
        $region22: #{tpu_custom_call.1} parent=15 // pred_check_branch
          %192 = sbr.rel (%p190) target = $region24
        $region23: #{tpu_custom_call.1} parent=15 // pred_region
          %s193 = sand.u32 %s77, 1
          %s194 = scalar_lea.sflag [#allocation7], %s193
          %s195 = sand.u32 %s77, 1
          %s196 = smul.addr %s195, 512
          %s197 = scalar_lea.vmem [#allocation6], %s196
          %s198 = smul.u32 32, %s26
          %s199 = smul.u32 4, %s27
          %s201 = ssub.s32 8192, 8192
          %202 = vsyncadd %s194, %s201
          %s203 = smul.addr %s198, 8
          %s204 = sadd.s32 %s199, %s203
          %s205 = smul.addr %s204, 64
          %s206 = scalar_lea.hbm %s1, %s205
          %s207 = sshll.u32 %s197, 4
          %s208 = int_to_ptr.vmem [resolvable:$true] %s207
          %213 = dma.hbm_to_vmem [thread:$0]  %s206, 8192, %s208, %s194, 512, 256, 16
        $region24: #{tpu_custom_call.1} parent=15 // pred_fallthru
          _
        // Predicated region
        $region25: #{tpu_custom_call.1} parent=15 // pred_check
          %p214 = pneg %p113
        $region26: #{tpu_custom_call.1} parent=15 // pred_check_branch
          %216 = sbr.rel (%p214) target = $region28
        $region27: #{tpu_custom_call.1} parent=15 // pred_region
          %s217 = smul.u32 2, %s26
          %p218 = scmp.lt.s32.totalorder %s217, 3
          %s219 = scalar_select %p218, %s217, 3
          %s220 = scalar_lea.vmem %s2, %s219
          %s221 = smul.u32 2, %s26
        $region28: #{tpu_custom_call.1} parent=15 // pred_fallthru
          _
      $region16: #{tpu_custom_call.1} parent=5 // pred_fallthru
        _
      %p222 = scmp.le.s32.totalorder 1, %s18
      %p223 = scmp.lt.s32.totalorder %s18, 9
      %p224 = pnand %p222, %p223
      %p225 = pneg %p224
      // Predicated region
      $region29: #{tpu_custom_call.1} parent=5 // pred_check
        _
      $region30: #{tpu_custom_call.1} parent=5 // pred_check_branch
        %227 = sbr.rel (%p224) target = $region32
      $region31: #{tpu_custom_call.1} parent=5 // pred_region
        %s228 = ssub.s32 %s18, 1
        %s229 = sand.u32 %s52, 1
        %s230 = scalar_lea.sflag [#allocation4], %s229
        %s231 = sand.u32 %s52, 1
        %s232 = smul.addr %s231, 512
        %s233 = scalar_lea.vmem [#allocation3], %s232
        // Predicated region
        $region33: #{tpu_custom_call.1} parent=31 // pred_check
          %p234 = pneg %p65
        $region34: #{tpu_custom_call.1} parent=31 // pred_check_branch
          %236 = sbr.rel (%p234) target = $region36
        $region35: #{tpu_custom_call.1} parent=31 // pred_region
          %237 = dma.done %s230, 8192
        $region36: #{tpu_custom_call.1} parent=31 // pred_fallthru
          _
        %s238 = sand.u32 %s80, 1
        %s239 = scalar_lea.sflag [#allocation7], %s238
        %s240 = sand.u32 %s80, 1
        %s241 = smul.addr %s240, 512
        %s242 = scalar_lea.vmem [#allocation6], %s241
        // Predicated region
        $region37: #{tpu_custom_call.1} parent=31 // pred_check
          %p243 = pneg %p93
        $region38: #{tpu_custom_call.1} parent=31 // pred_check_branch
          %245 = sbr.rel (%p243) target = $region40
        $region39: #{tpu_custom_call.1} parent=31 // pred_region
          %246 = dma.done %s239, 8192
        $region40: #{tpu_custom_call.1} parent=31 // pred_fallthru
          _
        %s247 = sand.u32 %s52, 1
        %s248 = scalar_lea.sflag [#allocation4], %s247
        %s249 = sand.u32 %s52, 1
        %s250 = smul.addr %s249, 512
        %s251 = scalar_lea.vmem [#allocation3], %s250
        %p252 = pneg %p65
        %p253 = pneg %p62
        %s254 = sand.u32 %s80, 1
        %s255 = scalar_lea.sflag [#allocation7], %s254
        %s256 = sand.u32 %s80, 1
        %s257 = smul.addr %s256, 512
        %s258 = scalar_lea.vmem [#allocation6], %s257
        %p259 = pneg %p93
        %p260 = pneg %p90
        %s261 = smul.u32 2, %s29
        %p262 = scmp.lt.s32.totalorder %s261, 3
        %s263 = scalar_select %p262, %s261, 3
        %s264 = scalar_lea.vmem %s2, %s263
        %p265 = pneg %p119
        %p266 = pneg %p116
        %p267 = pneg %p147
        %p268 = pneg %p144
        %s269 = sand.u32 %s134, 1
        %s270 = scalar_lea.sflag [#allocation5], %s269
        %s271 = sand.u32 %s134, 1
        %s272 = smul.addr %s271, 512
        %s273 = scalar_lea.vmem [#allocation8], %s272
        %s274 = smul.u32 32, %s28
        %s275 = smul.u32 4, %s30
        %s276 = smul.u32 32, %s29
        %s277 = smul.u32 4, %s30
        %s278 = smul.u32 2, %s29
        %p279 = scmp.lt.s32.totalorder %s278, 3
        %s280 = scalar_select %p279, %s278, 3
        %s281 = scalar_lea.vmem %s2, %s280
        %s282 = smul.u32 2, %s29
        %s283 = smul.u32 32, %s28
        %s284 = smul.u32 2, %s29
        %p285 = scmp.eq.s32.totalorder %s30, 0
        // Predicated region
        $region41: #{tpu_custom_call.1} parent=31 // pred_check
          %p286 = pneg %p285
        $region42: #{tpu_custom_call.1} parent=31 // pred_check_branch
          %288 = sbr.rel (%p286) target = $region44
        $region43: #{tpu_custom_call.1} parent=31 // pred_region
          %289 = vst [vmem:[#allocation2] sm:$0xff] 0.0
          %290 = vst [vmem:[#allocation2 + $0x8] sm:$0xff] 0.0
          %291 = vst [vmem:[#allocation2 + $0x10] sm:$0xff] 0.0
          %292 = vst [vmem:[#allocation2 + $0x18] sm:$0xff] 0.0
          %293 = vst [vmem:[#allocation2 + $0x20] sm:$0xff] 0.0
          %294 = vst [vmem:[#allocation2 + $0x28] sm:$0xff] 0.0
          %295 = vst [vmem:[#allocation2 + $0x30] sm:$0xff] 0.0
          %296 = vst [vmem:[#allocation2 + $0x38] sm:$0xff] 0.0
          %297 = vst [vmem:[#allocation2 + $0x40] sm:$0xff] 0.0
          %298 = vst [vmem:[#allocation2 + $0x48] sm:$0xff] 0.0
          %299 = vst [vmem:[#allocation2 + $0x50] sm:$0xff] 0.0
          %300 = vst [vmem:[#allocation2 + $0x58] sm:$0xff] 0.0
          %301 = vst [vmem:[#allocation2 + $0x60] sm:$0xff] 0.0
          %302 = vst [vmem:[#allocation2 + $0x68] sm:$0xff] 0.0
          %303 = vst [vmem:[#allocation2 + $0x70] sm:$0xff] 0.0
          %304 = vst [vmem:[#allocation2 + $0x78] sm:$0xff] 0.0
          %305 = vst [vmem:[#allocation2 + $0x80] sm:$0xff] 0.0
          %306 = vst [vmem:[#allocation2 + $0x88] sm:$0xff] 0.0
          %307 = vst [vmem:[#allocation2 + $0x90] sm:$0xff] 0.0
          %308 = vst [vmem:[#allocation2 + $0x98] sm:$0xff] 0.0
          %309 = vst [vmem:[#allocation2 + $0xa0] sm:$0xff] 0.0
          %310 = vst [vmem:[#allocation2 + $0xa8] sm:$0xff] 0.0
          %311 = vst [vmem:[#allocation2 + $0xb0] sm:$0xff] 0.0
          %312 = vst [vmem:[#allocation2 + $0xb8] sm:$0xff] 0.0
          %313 = vst [vmem:[#allocation2 + $0xc0] sm:$0xff] 0.0
          %314 = vst [vmem:[#allocation2 + $0xc8] sm:$0xff] 0.0
          %315 = vst [vmem:[#allocation2 + $0xd0] sm:$0xff] 0.0
          %316 = vst [vmem:[#allocation2 + $0xd8] sm:$0xff] 0.0
          %317 = vst [vmem:[#allocation2 + $0xe0] sm:$0xff] 0.0
          %318 = vst [vmem:[#allocation2 + $0xe8] sm:$0xff] 0.0
          %319 = vst [vmem:[#allocation2 + $0xf0] sm:$0xff] 0.0
          %320 = vst [vmem:[#allocation2 + $0xf8] sm:$0xff] 0.0
          %321 = vst [vmem:[#allocation2 + $0x100] sm:$0xff] 0.0
          %322 = vst [vmem:[#allocation2 + $0x108] sm:$0xff] 0.0
          %323 = vst [vmem:[#allocation2 + $0x110] sm:$0xff] 0.0
          %324 = vst [vmem:[#allocation2 + $0x118] sm:$0xff] 0.0
          %325 = vst [vmem:[#allocation2 + $0x120] sm:$0xff] 0.0
          %326 = vst [vmem:[#allocation2 + $0x128] sm:$0xff] 0.0
          %327 = vst [vmem:[#allocation2 + $0x130] sm:$0xff] 0.0
          %328 = vst [vmem:[#allocation2 + $0x138] sm:$0xff] 0.0
          %329 = vst [vmem:[#allocation2 + $0x140] sm:$0xff] 0.0
          %330 = vst [vmem:[#allocation2 + $0x148] sm:$0xff] 0.0
          %331 = vst [vmem:[#allocation2 + $0x150] sm:$0xff] 0.0
          %332 = vst [vmem:[#allocation2 + $0x158] sm:$0xff] 0.0
          %333 = vst [vmem:[#allocation2 + $0x160] sm:$0xff] 0.0
          %334 = vst [vmem:[#allocation2 + $0x168] sm:$0xff] 0.0
          %335 = vst [vmem:[#allocation2 + $0x170] sm:$0xff] 0.0
          %336 = vst [vmem:[#allocation2 + $0x178] sm:$0xff] 0.0
          %337 = vst [vmem:[#allocation2 + $0x180] sm:$0xff] 0.0
          %338 = vst [vmem:[#allocation2 + $0x188] sm:$0xff] 0.0
          %339 = vst [vmem:[#allocation2 + $0x190] sm:$0xff] 0.0
          %340 = vst [vmem:[#allocation2 + $0x198] sm:$0xff] 0.0
          %341 = vst [vmem:[#allocation2 + $0x1a0] sm:$0xff] 0.0
          %342 = vst [vmem:[#allocation2 + $0x1a8] sm:$0xff] 0.0
          %343 = vst [vmem:[#allocation2 + $0x1b0] sm:$0xff] 0.0
          %344 = vst [vmem:[#allocation2 + $0x1b8] sm:$0xff] 0.0
          %345 = vst [vmem:[#allocation2 + $0x1c0] sm:$0xff] 0.0
          %346 = vst [vmem:[#allocation2 + $0x1c8] sm:$0xff] 0.0
          %347 = vst [vmem:[#allocation2 + $0x1d0] sm:$0xff] 0.0
          %348 = vst [vmem:[#allocation2 + $0x1d8] sm:$0xff] 0.0
          %349 = vst [vmem:[#allocation2 + $0x1e0] sm:$0xff] 0.0
          %350 = vst [vmem:[#allocation2 + $0x1e8] sm:$0xff] 0.0
          %351 = vst [vmem:[#allocation2 + $0x1f0] sm:$0xff] 0.0
          %352 = vst [vmem:[#allocation2 + $0x1f8] sm:$0xff] 0.0
        $region44: #{tpu_custom_call.1} parent=31 // pred_fallthru
          _
        %v353 = vld [vmem:[#allocation2] sm:$0xff]
        %v354 = vld [vmem:[#allocation2 + $0x8] sm:$0xff]
        %v355 = vld [vmem:[#allocation2 + $0x10] sm:$0xff]
        %v356 = vld [vmem:[#allocation2 + $0x18] sm:$0xff]
        %v357 = vld [vmem:[#allocation2 + $0x20] sm:$0xff]
        %v358 = vld [vmem:[#allocation2 + $0x28] sm:$0xff]
        %v359 = vld [vmem:[#allocation2 + $0x30] sm:$0xff]
        %v360 = vld [vmem:[#allocation2 + $0x38] sm:$0xff]
        %v361 = vld [vmem:[#allocation2 + $0x40] sm:$0xff]
        %v362 = vld [vmem:[#allocation2 + $0x48] sm:$0xff]
        %v363 = vld [vmem:[#allocation2 + $0x50] sm:$0xff]
        %v364 = vld [vmem:[#allocation2 + $0x58] sm:$0xff]
        %v365 = vld [vmem:[#allocation2 + $0x60] sm:$0xff]
        %v366 = vld [vmem:[#allocation2 + $0x68] sm:$0xff]
        %v367 = vld [vmem:[#allocation2 + $0x70] sm:$0xff]
        %v368 = vld [vmem:[#allocation2 + $0x78] sm:$0xff]
        %v369 = vld [vmem:[#allocation2 + $0x80] sm:$0xff]
        %v370 = vld [vmem:[#allocation2 + $0x88] sm:$0xff]
        %v371 = vld [vmem:[#allocation2 + $0x90] sm:$0xff]
        %v372 = vld [vmem:[#allocation2 + $0x98] sm:$0xff]
        %v373 = vld [vmem:[#allocation2 + $0xa0] sm:$0xff]
        %v374 = vld [vmem:[#allocation2 + $0xa8] sm:$0xff]
        %v375 = vld [vmem:[#allocation2 + $0xb0] sm:$0xff]
        %v376 = vld [vmem:[#allocation2 + $0xb8] sm:$0xff]
        %v377 = vld [vmem:[#allocation2 + $0xc0] sm:$0xff]
        %v378 = vld [vmem:[#allocation2 + $0xc8] sm:$0xff]
        %v379 = vld [vmem:[#allocation2 + $0xd0] sm:$0xff]
        %v380 = vld [vmem:[#allocation2 + $0xd8] sm:$0xff]
        %v381 = vld [vmem:[#allocation2 + $0xe0] sm:$0xff]
        %v382 = vld [vmem:[#allocation2 + $0xe8] sm:$0xff]
        %v383 = vld [vmem:[#allocation2 + $0xf0] sm:$0xff]
        %v384 = vld [vmem:[#allocation2 + $0xf8] sm:$0xff]
        %v385 = vld [vmem:[#allocation2 + $0x100] sm:$0xff]
        %v386 = vld [vmem:[#allocation2 + $0x108] sm:$0xff]
        %v387 = vld [vmem:[#allocation2 + $0x110] sm:$0xff]
        %v388 = vld [vmem:[#allocation2 + $0x118] sm:$0xff]
        %v389 = vld [vmem:[#allocation2 + $0x120] sm:$0xff]
        %v390 = vld [vmem:[#allocation2 + $0x128] sm:$0xff]
        %v391 = vld [vmem:[#allocation2 + $0x130] sm:$0xff]
        %v392 = vld [vmem:[#allocation2 + $0x138] sm:$0xff]
        %v393 = vld [vmem:[#allocation2 + $0x140] sm:$0xff]
        %v394 = vld [vmem:[#allocation2 + $0x148] sm:$0xff]
        %v395 = vld [vmem:[#allocation2 + $0x150] sm:$0xff]
        %v396 = vld [vmem:[#allocation2 + $0x158] sm:$0xff]
        %v397 = vld [vmem:[#allocation2 + $0x160] sm:$0xff]
        %v398 = vld [vmem:[#allocation2 + $0x168] sm:$0xff]
        %v399 = vld [vmem:[#allocation2 + $0x170] sm:$0xff]
        %v400 = vld [vmem:[#allocation2 + $0x178] sm:$0xff]
        %v401 = vld [vmem:[#allocation2 + $0x180] sm:$0xff]
        %v402 = vld [vmem:[#allocation2 + $0x188] sm:$0xff]
        %v403 = vld [vmem:[#allocation2 + $0x190] sm:$0xff]
        %v404 = vld [vmem:[#allocation2 + $0x198] sm:$0xff]
        %v405 = vld [vmem:[#allocation2 + $0x1a0] sm:$0xff]
        %v406 = vld [vmem:[#allocation2 + $0x1a8] sm:$0xff]
        %v407 = vld [vmem:[#allocation2 + $0x1b0] sm:$0xff]
        %v408 = vld [vmem:[#allocation2 + $0x1b8] sm:$0xff]
        %v409 = vld [vmem:[#allocation2 + $0x1c0] sm:$0xff]
        %v410 = vld [vmem:[#allocation2 + $0x1c8] sm:$0xff]
        %v411 = vld [vmem:[#allocation2 + $0x1d0] sm:$0xff]
        %v412 = vld [vmem:[#allocation2 + $0x1d8] sm:$0xff]
        %v413 = vld [vmem:[#allocation2 + $0x1e0] sm:$0xff]
        %v414 = vld [vmem:[#allocation2 + $0x1e8] sm:$0xff]
        %v415 = vld [vmem:[#allocation2 + $0x1f0] sm:$0xff]
        %v416 = vld [vmem:[#allocation2 + $0x1f8] sm:$0xff]
        %v417 = vld [vmem:[%s233] sm:$0xff]
        %v418 = vld [vmem:[%s233 + $0x8] sm:$0xff]
        %v419 = vld [vmem:[%s233 + $0x10] sm:$0xff]
        %v420 = vld [vmem:[%s233 + $0x18] sm:$0xff]
        %v421 = vld [vmem:[%s233 + $0x20] sm:$0xff]
        %v422 = vld [vmem:[%s233 + $0x28] sm:$0xff]
        %v423 = vld [vmem:[%s233 + $0x30] sm:$0xff]
        %v424 = vld [vmem:[%s233 + $0x38] sm:$0xff]
        %v425 = vld [vmem:[%s233 + $0x40] sm:$0xff]
        %v426 = vld [vmem:[%s233 + $0x48] sm:$0xff]
        %v427 = vld [vmem:[%s233 + $0x50] sm:$0xff]
        %v428 = vld [vmem:[%s233 + $0x58] sm:$0xff]
        %v429 = vld [vmem:[%s233 + $0x60] sm:$0xff]
        %v430 = vld [vmem:[%s233 + $0x68] sm:$0xff]
        %v431 = vld [vmem:[%s233 + $0x70] sm:$0xff]
        %v432 = vld [vmem:[%s233 + $0x78] sm:$0xff]
        %v433 = vld [vmem:[%s233 + $0x80] sm:$0xff]
        %v434 = vld [vmem:[%s233 + $0x88] sm:$0xff]
        %v435 = vld [vmem:[%s233 + $0x90] sm:$0xff]
        %v436 = vld [vmem:[%s233 + $0x98] sm:$0xff]
        %v437 = vld [vmem:[%s233 + $0xa0] sm:$0xff]
        %v438 = vld [vmem:[%s233 + $0xa8] sm:$0xff]
        %v439 = vld [vmem:[%s233 + $0xb0] sm:$0xff]
        %v440 = vld [vmem:[%s233 + $0xb8] sm:$0xff]
        %v441 = vld [vmem:[%s233 + $0xc0] sm:$0xff]
        %v442 = vld [vmem:[%s233 + $0xc8] sm:$0xff]
        %v443 = vld [vmem:[%s233 + $0xd0] sm:$0xff]
        %v444 = vld [vmem:[%s233 + $0xd8] sm:$0xff]
        %v445 = vld [vmem:[%s233 + $0xe0] sm:$0xff]
        %v446 = vld [vmem:[%s233 + $0xe8] sm:$0xff]
        %v447 = vld [vmem:[%s233 + $0xf0] sm:$0xff]
        %v448 = vld [vmem:[%s233 + $0xf8] sm:$0xff]
        %v449 = vld [vmem:[%s233 + $0x100] sm:$0xff]
        %v450 = vld [vmem:[%s233 + $0x108] sm:$0xff]
        %v451 = vld [vmem:[%s233 + $0x110] sm:$0xff]
        %v452 = vld [vmem:[%s233 + $0x118] sm:$0xff]
        %v453 = vld [vmem:[%s233 + $0x120] sm:$0xff]
        %v454 = vld [vmem:[%s233 + $0x128] sm:$0xff]
        %v455 = vld [vmem:[%s233 + $0x130] sm:$0xff]
        %v456 = vld [vmem:[%s233 + $0x138] sm:$0xff]
        %v457 = vld [vmem:[%s233 + $0x140] sm:$0xff]
        %v458 = vld [vmem:[%s233 + $0x148] sm:$0xff]
        %v459 = vld [vmem:[%s233 + $0x150] sm:$0xff]
        %v460 = vld [vmem:[%s233 + $0x158] sm:$0xff]
        %v461 = vld [vmem:[%s233 + $0x160] sm:$0xff]
        %v462 = vld [vmem:[%s233 + $0x168] sm:$0xff]
        %v463 = vld [vmem:[%s233 + $0x170] sm:$0xff]
        %v464 = vld [vmem:[%s233 + $0x178] sm:$0xff]
        %v465 = vld [vmem:[%s233 + $0x180] sm:$0xff]
        %v466 = vld [vmem:[%s233 + $0x188] sm:$0xff]
        %v467 = vld [vmem:[%s233 + $0x190] sm:$0xff]
        %v468 = vld [vmem:[%s233 + $0x198] sm:$0xff]
        %v469 = vld [vmem:[%s233 + $0x1a0] sm:$0xff]
        %v470 = vld [vmem:[%s233 + $0x1a8] sm:$0xff]
        %v471 = vld [vmem:[%s233 + $0x1b0] sm:$0xff]
        %v472 = vld [vmem:[%s233 + $0x1b8] sm:$0xff]
        %v473 = vld [vmem:[%s233 + $0x1c0] sm:$0xff]
        %v474 = vld [vmem:[%s233 + $0x1c8] sm:$0xff]
        %v475 = vld [vmem:[%s233 + $0x1d0] sm:$0xff]
        %v476 = vld [vmem:[%s233 + $0x1d8] sm:$0xff]
        %v477 = vld [vmem:[%s233 + $0x1e0] sm:$0xff]
        %v478 = vld [vmem:[%s233 + $0x1e8] sm:$0xff]
        %v479 = vld [vmem:[%s233 + $0x1f0] sm:$0xff]
        %v480 = vld [vmem:[%s233 + $0x1f8] sm:$0xff]
        %v481 = vld [vmem:[%s242] sm:$0xff]
        %v482 = vld [vmem:[%s242 + $0x8] sm:$0xff]
        %v483 = vld [vmem:[%s242 + $0x10] sm:$0xff]
        %v484 = vld [vmem:[%s242 + $0x18] sm:$0xff]
        %v485 = vld [vmem:[%s242 + $0x20] sm:$0xff]
        %v486 = vld [vmem:[%s242 + $0x28] sm:$0xff]
        %v487 = vld [vmem:[%s242 + $0x30] sm:$0xff]
        %v488 = vld [vmem:[%s242 + $0x38] sm:$0xff]
        %v489 = vld [vmem:[%s242 + $0x40] sm:$0xff]
        %v490 = vld [vmem:[%s242 + $0x48] sm:$0xff]
        %v491 = vld [vmem:[%s242 + $0x50] sm:$0xff]
        %v492 = vld [vmem:[%s242 + $0x58] sm:$0xff]
        %v493 = vld [vmem:[%s242 + $0x60] sm:$0xff]
        %v494 = vld [vmem:[%s242 + $0x68] sm:$0xff]
        %v495 = vld [vmem:[%s242 + $0x70] sm:$0xff]
        %v496 = vld [vmem:[%s242 + $0x78] sm:$0xff]
        %v497 = vld [vmem:[%s242 + $0x80] sm:$0xff]
        %v498 = vld [vmem:[%s242 + $0x88] sm:$0xff]
        %v499 = vld [vmem:[%s242 + $0x90] sm:$0xff]
        %v500 = vld [vmem:[%s242 + $0x98] sm:$0xff]
        %v501 = vld [vmem:[%s242 + $0xa0] sm:$0xff]
        %v502 = vld [vmem:[%s242 + $0xa8] sm:$0xff]
        %v503 = vld [vmem:[%s242 + $0xb0] sm:$0xff]
        %v504 = vld [vmem:[%s242 + $0xb8] sm:$0xff]
        %v505 = vld [vmem:[%s242 + $0xc0] sm:$0xff]
        %v506 = vld [vmem:[%s242 + $0xc8] sm:$0xff]
        %v507 = vld [vmem:[%s242 + $0xd0] sm:$0xff]
        %v508 = vld [vmem:[%s242 + $0xd8] sm:$0xff]
        %v509 = vld [vmem:[%s242 + $0xe0] sm:$0xff]
        %v510 = vld [vmem:[%s242 + $0xe8] sm:$0xff]
        %v511 = vld [vmem:[%s242 + $0xf0] sm:$0xff]
        %v512 = vld [vmem:[%s242 + $0xf8] sm:$0xff]
        %v513 = vld [vmem:[%s242 + $0x100] sm:$0xff]
        %v514 = vld [vmem:[%s242 + $0x108] sm:$0xff]
        %v515 = vld [vmem:[%s242 + $0x110] sm:$0xff]
        %v516 = vld [vmem:[%s242 + $0x118] sm:$0xff]
        %v517 = vld [vmem:[%s242 + $0x120] sm:$0xff]
        %v518 = vld [vmem:[%s242 + $0x128] sm:$0xff]
        %v519 = vld [vmem:[%s242 + $0x130] sm:$0xff]
        %v520 = vld [vmem:[%s242 + $0x138] sm:$0xff]
        %v521 = vld [vmem:[%s242 + $0x140] sm:$0xff]
        %v522 = vld [vmem:[%s242 + $0x148] sm:$0xff]
        %v523 = vld [vmem:[%s242 + $0x150] sm:$0xff]
        %v524 = vld [vmem:[%s242 + $0x158] sm:$0xff]
        %v525 = vld [vmem:[%s242 + $0x160] sm:$0xff]
        %v526 = vld [vmem:[%s242 + $0x168] sm:$0xff]
        %v527 = vld [vmem:[%s242 + $0x170] sm:$0xff]
        %v528 = vld [vmem:[%s242 + $0x178] sm:$0xff]
        %v529 = vld [vmem:[%s242 + $0x180] sm:$0xff]
        %v530 = vld [vmem:[%s242 + $0x188] sm:$0xff]
        %v531 = vld [vmem:[%s242 + $0x190] sm:$0xff]
        %v532 = vld [vmem:[%s242 + $0x198] sm:$0xff]
        %v533 = vld [vmem:[%s242 + $0x1a0] sm:$0xff]
        %v534 = vld [vmem:[%s242 + $0x1a8] sm:$0xff]
        %v535 = vld [vmem:[%s242 + $0x1b0] sm:$0xff]
        %v536 = vld [vmem:[%s242 + $0x1b8] sm:$0xff]
        %v537 = vld [vmem:[%s242 + $0x1c0] sm:$0xff]
        %v538 = vld [vmem:[%s242 + $0x1c8] sm:$0xff]
        %v539 = vld [vmem:[%s242 + $0x1d0] sm:$0xff]
        %v540 = vld [vmem:[%s242 + $0x1d8] sm:$0xff]
        %v541 = vld [vmem:[%s242 + $0x1e0] sm:$0xff]
        %v542 = vld [vmem:[%s242 + $0x1e8] sm:$0xff]
        %v543 = vld [vmem:[%s242 + $0x1f0] sm:$0xff]
        %v544 = vld [vmem:[%s242 + $0x1f8] sm:$0xff]
        %v609 = vunpack.c.l.b16 %v417
        %v610 = vunpack.c.h.b16 %v417
        %v611 = vunpack.c.l.b16 %v418
        %v612 = vunpack.c.h.b16 %v418
        %v613 = vunpack.c.l.b16 %v419
        %v614 = vunpack.c.h.b16 %v419
        %v615 = vunpack.c.l.b16 %v420
        %v616 = vunpack.c.h.b16 %v420
        %v617 = vunpack.c.l.b16 %v421
        %v618 = vunpack.c.h.b16 %v421
        %v619 = vunpack.c.l.b16 %v422
        %v620 = vunpack.c.h.b16 %v422
        %v621 = vunpack.c.l.b16 %v423
        %v622 = vunpack.c.h.b16 %v423
        %v623 = vunpack.c.l.b16 %v424
        %v624 = vunpack.c.h.b16 %v424
        %v625 = vunpack.c.l.b16 %v425
        %v626 = vunpack.c.h.b16 %v425
        %v627 = vunpack.c.l.b16 %v426
        %v628 = vunpack.c.h.b16 %v426
        %v629 = vunpack.c.l.b16 %v427
        %v630 = vunpack.c.h.b16 %v427
        %v631 = vunpack.c.l.b16 %v428
        %v632 = vunpack.c.h.b16 %v428
        %v633 = vunpack.c.l.b16 %v429
        %v634 = vunpack.c.h.b16 %v429
        %v635 = vunpack.c.l.b16 %v430
        %v636 = vunpack.c.h.b16 %v430
        %v637 = vunpack.c.l.b16 %v431
        %v638 = vunpack.c.h.b16 %v431
        %v639 = vunpack.c.l.b16 %v432
        %v640 = vunpack.c.h.b16 %v432
        %v641 = vunpack.c.l.b16 %v433
        %v642 = vunpack.c.h.b16 %v433
        %v643 = vunpack.c.l.b16 %v434
        %v644 = vunpack.c.h.b16 %v434
        %v645 = vunpack.c.l.b16 %v435
        %v646 = vunpack.c.h.b16 %v435
        %v647 = vunpack.c.l.b16 %v436
        %v648 = vunpack.c.h.b16 %v436
        %v649 = vunpack.c.l.b16 %v437
        %v650 = vunpack.c.h.b16 %v437
        %v651 = vunpack.c.l.b16 %v438
        %v652 = vunpack.c.h.b16 %v438
        %v653 = vunpack.c.l.b16 %v439
        %v654 = vunpack.c.h.b16 %v439
        %v655 = vunpack.c.l.b16 %v440
        %v656 = vunpack.c.h.b16 %v440
        %v657 = vunpack.c.l.b16 %v441
        %v658 = vunpack.c.h.b16 %v441
        %v659 = vunpack.c.l.b16 %v442
        %v660 = vunpack.c.h.b16 %v442
        %v661 = vunpack.c.l.b16 %v443
        %v662 = vunpack.c.h.b16 %v443
        %v663 = vunpack.c.l.b16 %v444
        %v664 = vunpack.c.h.b16 %v444
        %v665 = vunpack.c.l.b16 %v445
        %v666 = vunpack.c.h.b16 %v445
        %v667 = vunpack.c.l.b16 %v446
        %v668 = vunpack.c.h.b16 %v446
        %v669 = vunpack.c.l.b16 %v447
        %v670 = vunpack.c.h.b16 %v447
        %v671 = vunpack.c.l.b16 %v448
        %v672 = vunpack.c.h.b16 %v448
        %v673 = vunpack.c.l.b16 %v449
        %v674 = vunpack.c.h.b16 %v449
        %v675 = vunpack.c.l.b16 %v450
        %v676 = vunpack.c.h.b16 %v450
        %v677 = vunpack.c.l.b16 %v451
        %v678 = vunpack.c.h.b16 %v451
        %v679 = vunpack.c.l.b16 %v452
        %v680 = vunpack.c.h.b16 %v452
        %v681 = vunpack.c.l.b16 %v453
        %v682 = vunpack.c.h.b16 %v453
        %v683 = vunpack.c.l.b16 %v454
        %v684 = vunpack.c.h.b16 %v454
        %v685 = vunpack.c.l.b16 %v455
        %v686 = vunpack.c.h.b16 %v455
        %v687 = vunpack.c.l.b16 %v456
        %v688 = vunpack.c.h.b16 %v456
        %v689 = vunpack.c.l.b16 %v457
        %v690 = vunpack.c.h.b16 %v457
        %v691 = vunpack.c.l.b16 %v458
        %v692 = vunpack.c.h.b16 %v458
        %v693 = vunpack.c.l.b16 %v459
        %v694 = vunpack.c.h.b16 %v459
        %v695 = vunpack.c.l.b16 %v460
        %v696 = vunpack.c.h.b16 %v460
        %v697 = vunpack.c.l.b16 %v461
        %v698 = vunpack.c.h.b16 %v461
        %v699 = vunpack.c.l.b16 %v462
        %v700 = vunpack.c.h.b16 %v462
        %v701 = vunpack.c.l.b16 %v463
        %v702 = vunpack.c.h.b16 %v463
        %v703 = vunpack.c.l.b16 %v464
        %v704 = vunpack.c.h.b16 %v464
        %v705 = vunpack.c.l.b16 %v465
        %v706 = vunpack.c.h.b16 %v465
        %v707 = vunpack.c.l.b16 %v466
        %v708 = vunpack.c.h.b16 %v466
        %v709 = vunpack.c.l.b16 %v467
        %v710 = vunpack.c.h.b16 %v467
        %v711 = vunpack.c.l.b16 %v468
        %v712 = vunpack.c.h.b16 %v468
        %v713 = vunpack.c.l.b16 %v469
        %v714 = vunpack.c.h.b16 %v469
        %v715 = vunpack.c.l.b16 %v470
        %v716 = vunpack.c.h.b16 %v470
        %v717 = vunpack.c.l.b16 %v471
        %v718 = vunpack.c.h.b16 %v471
        %v719 = vunpack.c.l.b16 %v472
        %v720 = vunpack.c.h.b16 %v472
        %v721 = vunpack.c.l.b16 %v473
        %v722 = vunpack.c.h.b16 %v473
        %v723 = vunpack.c.l.b16 %v474
        %v724 = vunpack.c.h.b16 %v474
        %v725 = vunpack.c.l.b16 %v475
        %v726 = vunpack.c.h.b16 %v475
        %v727 = vunpack.c.l.b16 %v476
        %v728 = vunpack.c.h.b16 %v476
        %v729 = vunpack.c.l.b16 %v477
        %v730 = vunpack.c.h.b16 %v477
        %v731 = vunpack.c.l.b16 %v478
        %v732 = vunpack.c.h.b16 %v478
        %v733 = vunpack.c.l.b16 %v479
        %v734 = vunpack.c.h.b16 %v479
        %v735 = vunpack.c.l.b16 %v480
        %v736 = vunpack.c.h.b16 %v480
        %v737 = vpack.c.b16 %v613, %v609
        %v738 = vpack.c.b16 %v614, %v610
        %v739 = vpack.c.b16 %v615, %v611
        %v740 = vpack.c.b16 %v616, %v612
        %v741 = vpack.c.b16 %v621, %v617
        %v742 = vpack.c.b16 %v622, %v618
        %v743 = vpack.c.b16 %v623, %v619
        %v744 = vpack.c.b16 %v624, %v620
        %v745 = vpack.c.b16 %v629, %v625
        %v746 = vpack.c.b16 %v630, %v626
        %v747 = vpack.c.b16 %v631, %v627
        %v748 = vpack.c.b16 %v632, %v628
        %v749 = vpack.c.b16 %v637, %v633
        %v750 = vpack.c.b16 %v638, %v634
        %v751 = vpack.c.b16 %v639, %v635
        %v752 = vpack.c.b16 %v640, %v636
        %v753 = vpack.c.b16 %v645, %v641
        %v754 = vpack.c.b16 %v646, %v642
        %v755 = vpack.c.b16 %v647, %v643
        %v756 = vpack.c.b16 %v648, %v644
        %v757 = vpack.c.b16 %v653, %v649
        %v758 = vpack.c.b16 %v654, %v650
        %v759 = vpack.c.b16 %v655, %v651
        %v760 = vpack.c.b16 %v656, %v652
        %v761 = vpack.c.b16 %v661, %v657
        %v762 = vpack.c.b16 %v662, %v658
        %v763 = vpack.c.b16 %v663, %v659
        %v764 = vpack.c.b16 %v664, %v660
        %v765 = vpack.c.b16 %v669, %v665
        %v766 = vpack.c.b16 %v670, %v666
        %v767 = vpack.c.b16 %v671, %v667
        %v768 = vpack.c.b16 %v672, %v668
        %v769 = vpack.c.b16 %v677, %v673
        %v770 = vpack.c.b16 %v678, %v674
        %v771 = vpack.c.b16 %v679, %v675
        %v772 = vpack.c.b16 %v680, %v676
        %v773 = vpack.c.b16 %v685, %v681
        %v774 = vpack.c.b16 %v686, %v682
        %v775 = vpack.c.b16 %v687, %v683
        %v776 = vpack.c.b16 %v688, %v684
        %v777 = vpack.c.b16 %v693, %v689
        %v778 = vpack.c.b16 %v694, %v690
        %v779 = vpack.c.b16 %v695, %v691
        %v780 = vpack.c.b16 %v696, %v692
        %v781 = vpack.c.b16 %v701, %v697
        %v782 = vpack.c.b16 %v702, %v698
        %v783 = vpack.c.b16 %v703, %v699
        %v784 = vpack.c.b16 %v704, %v700
        %v785 = vpack.c.b16 %v709, %v705
        %v786 = vpack.c.b16 %v710, %v706
        %v787 = vpack.c.b16 %v711, %v707
        %v788 = vpack.c.b16 %v712, %v708
        %v789 = vpack.c.b16 %v717, %v713
        %v790 = vpack.c.b16 %v718, %v714
        %v791 = vpack.c.b16 %v719, %v715
        %v792 = vpack.c.b16 %v720, %v716
        %v793 = vpack.c.b16 %v725, %v721
        %v794 = vpack.c.b16 %v726, %v722
        %v795 = vpack.c.b16 %v727, %v723
        %v796 = vpack.c.b16 %v728, %v724
        %v797 = vpack.c.b16 %v733, %v729
        %v798 = vpack.c.b16 %v734, %v730
        %v799 = vpack.c.b16 %v735, %v731
        %v800 = vpack.c.b16 %v736, %v732
        %v929 = vunpack.c.l.b16 %v481
        %v930 = vunpack.c.h.b16 %v481
        %v931 = vunpack.c.l.b16 %v482
        %v932 = vunpack.c.h.b16 %v482
        %v933 = vunpack.c.l.b16 %v483
        %v934 = vunpack.c.h.b16 %v483
        %v935 = vunpack.c.l.b16 %v484
        %v936 = vunpack.c.h.b16 %v484
        %v937 = vunpack.c.l.b16 %v485
        %v938 = vunpack.c.h.b16 %v485
        %v939 = vunpack.c.l.b16 %v486
        %v940 = vunpack.c.h.b16 %v486
        %v941 = vunpack.c.l.b16 %v487
        %v942 = vunpack.c.h.b16 %v487
        %v943 = vunpack.c.l.b16 %v488
        %v944 = vunpack.c.h.b16 %v488
        %v945 = vunpack.c.l.b16 %v489
        %v946 = vunpack.c.h.b16 %v489
        %v947 = vunpack.c.l.b16 %v490
        %v948 = vunpack.c.h.b16 %v490
        %v949 = vunpack.c.l.b16 %v491
        %v950 = vunpack.c.h.b16 %v491
        %v951 = vunpack.c.l.b16 %v492
        %v952 = vunpack.c.h.b16 %v492
        %v953 = vunpack.c.l.b16 %v493
        %v954 = vunpack.c.h.b16 %v493
        %v955 = vunpack.c.l.b16 %v494
        %v956 = vunpack.c.h.b16 %v494
        %v957 = vunpack.c.l.b16 %v495
        %v958 = vunpack.c.h.b16 %v495
        %v959 = vunpack.c.l.b16 %v496
        %v960 = vunpack.c.h.b16 %v496
        %v961 = vunpack.c.l.b16 %v497
        %v962 = vunpack.c.h.b16 %v497
        %v963 = vunpack.c.l.b16 %v498
        %v964 = vunpack.c.h.b16 %v498
        %v965 = vunpack.c.l.b16 %v499
        %v966 = vunpack.c.h.b16 %v499
        %v967 = vunpack.c.l.b16 %v500
        %v968 = vunpack.c.h.b16 %v500
        %v969 = vunpack.c.l.b16 %v501
        %v970 = vunpack.c.h.b16 %v501
        %v971 = vunpack.c.l.b16 %v502
        %v972 = vunpack.c.h.b16 %v502
        %v973 = vunpack.c.l.b16 %v503
        %v974 = vunpack.c.h.b16 %v503
        %v975 = vunpack.c.l.b16 %v504
        %v976 = vunpack.c.h.b16 %v504
        %v977 = vunpack.c.l.b16 %v505
        %v978 = vunpack.c.h.b16 %v505
        %v979 = vunpack.c.l.b16 %v506
        %v980 = vunpack.c.h.b16 %v506
        %v981 = vunpack.c.l.b16 %v507
        %v982 = vunpack.c.h.b16 %v507
        %v983 = vunpack.c.l.b16 %v508
        %v984 = vunpack.c.h.b16 %v508
        %v985 = vunpack.c.l.b16 %v509
        %v986 = vunpack.c.h.b16 %v509
        %v987 = vunpack.c.l.b16 %v510
        %v988 = vunpack.c.h.b16 %v510
        %v989 = vunpack.c.l.b16 %v511
        %v990 = vunpack.c.h.b16 %v511
        %v991 = vunpack.c.l.b16 %v512
        %v992 = vunpack.c.h.b16 %v512
        %v993 = vunpack.c.l.b16 %v513
        %v994 = vunpack.c.h.b16 %v513
        %v995 = vunpack.c.l.b16 %v514
        %v996 = vunpack.c.h.b16 %v514
        %v997 = vunpack.c.l.b16 %v515
        %v998 = vunpack.c.h.b16 %v515
        %v999 = vunpack.c.l.b16 %v516
        %v1000 = vunpack.c.h.b16 %v516
        %v1001 = vunpack.c.l.b16 %v517
        %v1002 = vunpack.c.h.b16 %v517
        %v1003 = vunpack.c.l.b16 %v518
        %v1004 = vunpack.c.h.b16 %v518
        %v1005 = vunpack.c.l.b16 %v519
        %v1006 = vunpack.c.h.b16 %v519
        %v1007 = vunpack.c.l.b16 %v520
        %v1008 = vunpack.c.h.b16 %v520
        %v1009 = vunpack.c.l.b16 %v521
        %v1010 = vunpack.c.h.b16 %v521
        %v1011 = vunpack.c.l.b16 %v522
        %v1012 = vunpack.c.h.b16 %v522
        %v1013 = vunpack.c.l.b16 %v523
        %v1014 = vunpack.c.h.b16 %v523
        %v1015 = vunpack.c.l.b16 %v524
        %v1016 = vunpack.c.h.b16 %v524
        %v1017 = vunpack.c.l.b16 %v525
        %v1018 = vunpack.c.h.b16 %v525
        %v1019 = vunpack.c.l.b16 %v526
        %v1020 = vunpack.c.h.b16 %v526
        %v1021 = vunpack.c.l.b16 %v527
        %v1022 = vunpack.c.h.b16 %v527
        %v1023 = vunpack.c.l.b16 %v528
        %v1024 = vunpack.c.h.b16 %v528
        %v1025 = vunpack.c.l.b16 %v529
        %v1026 = vunpack.c.h.b16 %v529
        %v1027 = vunpack.c.l.b16 %v530
        %v1028 = vunpack.c.h.b16 %v530
        %v1029 = vunpack.c.l.b16 %v531
        %v1030 = vunpack.c.h.b16 %v531
        %v1031 = vunpack.c.l.b16 %v532
        %v1032 = vunpack.c.h.b16 %v532
        %v1033 = vunpack.c.l.b16 %v533
        %v1034 = vunpack.c.h.b16 %v533
        %v1035 = vunpack.c.l.b16 %v534
        %v1036 = vunpack.c.h.b16 %v534
        %v1037 = vunpack.c.l.b16 %v535
        %v1038 = vunpack.c.h.b16 %v535
        %v1039 = vunpack.c.l.b16 %v536
        %v1040 = vunpack.c.h.b16 %v536
        %v1041 = vunpack.c.l.b16 %v537
        %v1042 = vunpack.c.h.b16 %v537
        %v1043 = vunpack.c.l.b16 %v538
        %v1044 = vunpack.c.h.b16 %v538
        %v1045 = vunpack.c.l.b16 %v539
        %v1046 = vunpack.c.h.b16 %v539
        %v1047 = vunpack.c.l.b16 %v540
        %v1048 = vunpack.c.h.b16 %v540
        %v1049 = vunpack.c.l.b16 %v541
        %v1050 = vunpack.c.h.b16 %v541
        %v1051 = vunpack.c.l.b16 %v542
        %v1052 = vunpack.c.h.b16 %v542
        %v1053 = vunpack.c.l.b16 %v543
        %v1054 = vunpack.c.h.b16 %v543
        %v1055 = vunpack.c.l.b16 %v544
        %v1056 = vunpack.c.h.b16 %v544
        %v1057 = vpack.c.b16 %v933, %v929
        %v1058 = vpack.c.b16 %v934, %v930
        %v1059 = vpack.c.b16 %v935, %v931
        %v1060 = vpack.c.b16 %v936, %v932
        %v1061 = vpack.c.b16 %v941, %v937
        %v1062 = vpack.c.b16 %v942, %v938
        %v1063 = vpack.c.b16 %v943, %v939
        %v1064 = vpack.c.b16 %v944, %v940
        %v1065 = vpack.c.b16 %v949, %v945
        %v1066 = vpack.c.b16 %v950, %v946
        %v1067 = vpack.c.b16 %v951, %v947
        %v1068 = vpack.c.b16 %v952, %v948
        %v1069 = vpack.c.b16 %v957, %v953
        %v1070 = vpack.c.b16 %v958, %v954
        %v1071 = vpack.c.b16 %v959, %v955
        %v1072 = vpack.c.b16 %v960, %v956
        %v1073 = vpack.c.b16 %v965, %v961
        %v1074 = vpack.c.b16 %v966, %v962
        %v1075 = vpack.c.b16 %v967, %v963
        %v1076 = vpack.c.b16 %v968, %v964
        %v1077 = vpack.c.b16 %v973, %v969
        %v1078 = vpack.c.b16 %v974, %v970
        %v1079 = vpack.c.b16 %v975, %v971
        %v1080 = vpack.c.b16 %v976, %v972
        %v1081 = vpack.c.b16 %v981, %v977
        %v1082 = vpack.c.b16 %v982, %v978
        %v1083 = vpack.c.b16 %v983, %v979
        %v1084 = vpack.c.b16 %v984, %v980
        %v1085 = vpack.c.b16 %v989, %v985
        %v1086 = vpack.c.b16 %v990, %v986
        %v1087 = vpack.c.b16 %v991, %v987
        %v1088 = vpack.c.b16 %v992, %v988
        %v1089 = vpack.c.b16 %v997, %v993
        %v1090 = vpack.c.b16 %v998, %v994
        %v1091 = vpack.c.b16 %v999, %v995
        %v1092 = vpack.c.b16 %v1000, %v996
        %v1093 = vpack.c.b16 %v1005, %v1001
        %v1094 = vpack.c.b16 %v1006, %v1002
        %v1095 = vpack.c.b16 %v1007, %v1003
        %v1096 = vpack.c.b16 %v1008, %v1004
        %v1097 = vpack.c.b16 %v1013, %v1009
        %v1098 = vpack.c.b16 %v1014, %v1010
        %v1099 = vpack.c.b16 %v1015, %v1011
        %v1100 = vpack.c.b16 %v1016, %v1012
        %v1101 = vpack.c.b16 %v1021, %v1017
        %v1102 = vpack.c.b16 %v1022, %v1018
        %v1103 = vpack.c.b16 %v1023, %v1019
        %v1104 = vpack.c.b16 %v1024, %v1020
        %v1105 = vpack.c.b16 %v1029, %v1025
        %v1106 = vpack.c.b16 %v1030, %v1026
        %v1107 = vpack.c.b16 %v1031, %v1027
        %v1108 = vpack.c.b16 %v1032, %v1028
        %v1109 = vpack.c.b16 %v1037, %v1033
        %v1110 = vpack.c.b16 %v1038, %v1034
        %v1111 = vpack.c.b16 %v1039, %v1035
        %v1112 = vpack.c.b16 %v1040, %v1036
        %v1113 = vpack.c.b16 %v1045, %v1041
        %v1114 = vpack.c.b16 %v1046, %v1042
        %v1115 = vpack.c.b16 %v1047, %v1043
        %v1116 = vpack.c.b16 %v1048, %v1044
        %v1117 = vpack.c.b16 %v1053, %v1049
        %v1118 = vpack.c.b16 %v1054, %v1050
        %v1119 = vpack.c.b16 %v1055, %v1051
        %v1120 = vpack.c.b16 %v1056, %v1052
        %1185 = vmatprep.subr.bf16.mxu0 %v1058
        %1186 = vmatpush1.bf16.xpose.msra.mxu0 %v1057
        %1187 = vmatprep.subr.bf16.mxu0 %v1062
        %1188 = vmatpush1.bf16.xpose.msra.mxu0 %v1061
        %1189 = vmatprep.subr.bf16.mxu0 %v1066
        %1190 = vmatpush1.bf16.xpose.msra.mxu0 %v1065
        %1191 = vmatprep.subr.bf16.mxu0 %v1070
        %1192 = vmatpush1.bf16.xpose.msra.mxu0 %v1069
        %1193 = vmatprep.subr.bf16.mxu0 %v1074
        %1194 = vmatpush1.bf16.xpose.msra.mxu0 %v1073
        %1195 = vmatprep.subr.bf16.mxu0 %v1078
        %1196 = vmatpush1.bf16.xpose.msra.mxu0 %v1077
        %1197 = vmatprep.subr.bf16.mxu0 %v1082
        %1198 = vmatpush1.bf16.xpose.msra.mxu0 %v1081
        %1199 = vmatprep.subr.bf16.mxu0 %v1086
        %1200 = vmatpush1.bf16.xpose.msra.mxu0 %v1085
        %1201 = vmatprep.subr.bf16.mxu0 %v1090
        %1202 = vmatpush1.bf16.xpose.msra.mxu0 %v1089
        %1203 = vmatprep.subr.bf16.mxu0 %v1094
        %1204 = vmatpush1.bf16.xpose.msra.mxu0 %v1093
        %1205 = vmatprep.subr.bf16.mxu0 %v1098
        %1206 = vmatpush1.bf16.xpose.msra.mxu0 %v1097
        %1207 = vmatprep.subr.bf16.mxu0 %v1102
        %1208 = vmatpush1.bf16.xpose.msra.mxu0 %v1101
        %1209 = vmatprep.subr.bf16.mxu0 %v1106
        %1210 = vmatpush1.bf16.xpose.msra.mxu0 %v1105
        %1211 = vmatprep.subr.bf16.mxu0 %v1110
        %1212 = vmatpush1.bf16.xpose.msra.mxu0 %v1109
        %1213 = vmatprep.subr.bf16.mxu0 %v1114
        %1214 = vmatpush1.bf16.xpose.msra.mxu0 %v1113
        %1215 = vmatprep.subr.bf16.mxu0 %v1118
        %1216 = vmatpush1.bf16.xpose.msra.mxu0 %v1117
        %1217 = vmatprep.mubr.bf16.mxu0 %v738
        %1218 = vmatmul.mubr.bf16.gmra.mrb[0].mxu0 %v737
        %v1219 = vpop.f32.mrb[0].mxu0
        %v1220 = vadd.f32 0.0, %v1219
        %v1221 = vpop.f32.mrb[0].mxu0
        %v1222 = vadd.f32 0.0, %v1221
        %v1223 = vpop.f32.mrb[0].mxu0
        %v1224 = vadd.f32 0.0, %v1223
        %v1225 = vpop.f32.mrb[0].mxu0
        %v1226 = vadd.f32 0.0, %v1225
        %1227 = vmatprep.mubr.bf16.mxu0 %v742
        %1228 = vmatmul.mubr.bf16.gmra.mrb[0].mxu0 %v741
        %v1229 = vpop.f32.mrb[0].mxu0
        %v1230 = vadd.f32 0.0, %v1229
        %v1231 = vpop.f32.mrb[0].mxu0
        %v1232 = vadd.f32 0.0, %v1231
        %v1233 = vpop.f32.mrb[0].mxu0
        %v1234 = vadd.f32 0.0, %v1233
        %v1235 = vpop.f32.mrb[0].mxu0
        %v1236 = vadd.f32 0.0, %v1235
        %1237 = vmatprep.mubr.bf16.mxu0 %v746
        %1238 = vmatmul.mubr.bf16.gmra.mrb[0].mxu0 %v745
        %v1239 = vpop.f32.mrb[0].mxu0
        %v1240 = vadd.f32 0.0, %v1239
        %v1241 = vpop.f32.mrb[0].mxu0
        %v1242 = vadd.f32 0.0, %v1241
        %v1243 = vpop.f32.mrb[0].mxu0
        %v1244 = vadd.f32 0.0, %v1243
        %v1245 = vpop.f32.mrb[0].mxu0
        %v1246 = vadd.f32 0.0, %v1245
        %1247 = vmatprep.mubr.bf16.mxu0 %v750
        %1248 = vmatmul.mubr.bf16.gmra.mrb[0].mxu0 %v749
        %v1249 = vpop.f32.mrb[0].mxu0
        %v1250 = vadd.f32 0.0, %v1249
        %v1251 = vpop.f32.mrb[0].mxu0
        %v1252 = vadd.f32 0.0, %v1251
        %v1253 = vpop.f32.mrb[0].mxu0
        %v1254 = vadd.f32 0.0, %v1253
        %v1255 = vpop.f32.mrb[0].mxu0
        %v1256 = vadd.f32 0.0, %v1255
        %1257 = vmatprep.mubr.bf16.mxu0 %v754
        %1258 = vmatmul.mubr.bf16.gmra.mrb[0].mxu0 %v753
        %v1259 = vpop.f32.mrb[0].mxu0
        %v1260 = vadd.f32 0.0, %v1259
        %v1261 = vpop.f32.mrb[0].mxu0
        %v1262 = vadd.f32 0.0, %v1261
        %v1263 = vpop.f32.mrb[0].mxu0
        %v1264 = vadd.f32 0.0, %v1263
        %v1265 = vpop.f32.mrb[0].mxu0
        %v1266 = vadd.f32 0.0, %v1265
        %1267 = vmatprep.mubr.bf16.mxu0 %v758
        %1268 = vmatmul.mubr.bf16.gmra.mrb[0].mxu0 %v757
        %v1269 = vpop.f32.mrb[0].mxu0
        %v1270 = vadd.f32 0.0, %v1269
        %v1271 = vpop.f32.mrb[0].mxu0
        %v1272 = vadd.f32 0.0, %v1271
        %v1273 = vpop.f32.mrb[0].mxu0
        %v1274 = vadd.f32 0.0, %v1273
        %v1275 = vpop.f32.mrb[0].mxu0
        %v1276 = vadd.f32 0.0, %v1275
        %1277 = vmatprep.mubr.bf16.mxu0 %v762
        %1278 = vmatmul.mubr.bf16.gmra.mrb[0].mxu0 %v761
        %v1279 = vpop.f32.mrb[0].mxu0
        %v1280 = vadd.f32 0.0, %v1279
        %v1281 = vpop.f32.mrb[0].mxu0
        %v1282 = vadd.f32 0.0, %v1281
        %v1283 = vpop.f32.mrb[0].mxu0
        %v1284 = vadd.f32 0.0, %v1283
        %v1285 = vpop.f32.mrb[0].mxu0
        %v1286 = vadd.f32 0.0, %v1285
        %1287 = vmatprep.mubr.bf16.mxu0 %v766
        %1288 = vmatmul.mubr.bf16.gmra.mrb[0].mxu0 %v765
        %v1289 = vpop.f32.mrb[0].mxu0
        %v1290 = vadd.f32 0.0, %v1289
        %v1291 = vpop.f32.mrb[0].mxu0
        %v1292 = vadd.f32 0.0, %v1291
        %v1293 = vpop.f32.mrb[0].mxu0
        %v1294 = vadd.f32 0.0, %v1293
        %v1295 = vpop.f32.mrb[0].mxu0
        %v1296 = vadd.f32 0.0, %v1295
        %1297 = vmatprep.mubr.bf16.mxu0 %v770
        %1298 = vmatmul.mubr.bf16.gmra.mrb[0].mxu0 %v769
        %v1299 = vpop.f32.mrb[0].mxu0
        %v1300 = vadd.f32 0.0, %v1299
        %v1301 = vpop.f32.mrb[0].mxu0
        %v1302 = vadd.f32 0.0, %v1301
        %v1303 = vpop.f32.mrb[0].mxu0
        %v1304 = vadd.f32 0.0, %v1303
        %v1305 = vpop.f32.mrb[0].mxu0
        %v1306 = vadd.f32 0.0, %v1305
        %1307 = vmatprep.mubr.bf16.mxu0 %v774
        %1308 = vmatmul.mubr.bf16.gmra.mrb[0].mxu0 %v773
        %v1309 = vpop.f32.mrb[0].mxu0
        %v1310 = vadd.f32 0.0, %v1309
        %v1311 = vpop.f32.mrb[0].mxu0
        %v1312 = vadd.f32 0.0, %v1311
        %v1313 = vpop.f32.mrb[0].mxu0
        %v1314 = vadd.f32 0.0, %v1313
        %v1315 = vpop.f32.mrb[0].mxu0
        %v1316 = vadd.f32 0.0, %v1315
        %1317 = vmatprep.mubr.bf16.mxu0 %v778
        %1318 = vmatmul.mubr.bf16.gmra.mrb[0].mxu0 %v777
        %v1319 = vpop.f32.mrb[0].mxu0
        %v1320 = vadd.f32 0.0, %v1319
        %v1321 = vpop.f32.mrb[0].mxu0
        %v1322 = vadd.f32 0.0, %v1321
        %v1323 = vpop.f32.mrb[0].mxu0
        %v1324 = vadd.f32 0.0, %v1323
        %v1325 = vpop.f32.mrb[0].mxu0
        %v1326 = vadd.f32 0.0, %v1325
        %1327 = vmatprep.mubr.bf16.mxu0 %v782
        %1328 = vmatmul.mubr.bf16.gmra.mrb[0].mxu0 %v781
        %v1329 = vpop.f32.mrb[0].mxu0
        %v1330 = vadd.f32 0.0, %v1329
        %v1331 = vpop.f32.mrb[0].mxu0
        %v1332 = vadd.f32 0.0, %v1331
        %v1333 = vpop.f32.mrb[0].mxu0
        %v1334 = vadd.f32 0.0, %v1333
        %v1335 = vpop.f32.mrb[0].mxu0
        %v1336 = vadd.f32 0.0, %v1335
        %1337 = vmatprep.mubr.bf16.mxu0 %v786
        %1338 = vmatmul.mubr.bf16.gmra.mrb[0].mxu0 %v785
        %v1339 = vpop.f32.mrb[0].mxu0
        %v1340 = vadd.f32 0.0, %v1339
        %v1341 = vpop.f32.mrb[0].mxu0
        %v1342 = vadd.f32 0.0, %v1341
        %v1343 = vpop.f32.mrb[0].mxu0
        %v1344 = vadd.f32 0.0, %v1343
        %v1345 = vpop.f32.mrb[0].mxu0
        %v1346 = vadd.f32 0.0, %v1345
        %1347 = vmatprep.mubr.bf16.mxu0 %v790
        %1348 = vmatmul.mubr.bf16.gmra.mrb[0].mxu0 %v789
        %v1349 = vpop.f32.mrb[0].mxu0
        %v1350 = vadd.f32 0.0, %v1349
        %v1351 = vpop.f32.mrb[0].mxu0
        %v1352 = vadd.f32 0.0, %v1351
        %v1353 = vpop.f32.mrb[0].mxu0
        %v1354 = vadd.f32 0.0, %v1353
        %v1355 = vpop.f32.mrb[0].mxu0
        %v1356 = vadd.f32 0.0, %v1355
        %1357 = vmatprep.mubr.bf16.mxu0 %v794
        %1358 = vmatmul.mubr.bf16.gmra.mrb[0].mxu0 %v793
        %v1359 = vpop.f32.mrb[0].mxu0
        %v1360 = vadd.f32 0.0, %v1359
        %v1361 = vpop.f32.mrb[0].mxu0
        %v1362 = vadd.f32 0.0, %v1361
        %v1363 = vpop.f32.mrb[0].mxu0
        %v1364 = vadd.f32 0.0, %v1363
        %v1365 = vpop.f32.mrb[0].mxu0
        %v1366 = vadd.f32 0.0, %v1365
        %1367 = vmatprep.mubr.bf16.mxu0 %v798
        %1368 = vmatmul.mubr.bf16.gmra.mrb[0].mxu0 %v797
        %v1369 = vpop.f32.mrb[0].mxu0
        %v1370 = vadd.f32 0.0, %v1369
        %v1371 = vpop.f32.mrb[0].mxu0
        %v1372 = vadd.f32 0.0, %v1371
        %v1373 = vpop.f32.mrb[0].mxu0
        %v1374 = vadd.f32 0.0, %v1373
        %v1375 = vpop.f32.mrb[0].mxu0
        %v1376 = vadd.f32 0.0, %v1375
        %1377 = vdwg.mxu0
        %1378 = vmatprep.subr.bf16.mxu0 %v1060
        %1379 = vmatpush1.bf16.xpose.msra.mxu0 %v1059
        %1380 = vmatprep.subr.bf16.mxu0 %v1064
        %1381 = vmatpush1.bf16.xpose.msra.mxu0 %v1063
        %1382 = vmatprep.subr.bf16.mxu0 %v1068
        %1383 = vmatpush1.bf16.xpose.msra.mxu0 %v1067
        %1384 = vmatprep.subr.bf16.mxu0 %v1072
        %1385 = vmatpush1.bf16.xpose.msra.mxu0 %v1071
        %1386 = vmatprep.subr.bf16.mxu0 %v1076
        %1387 = vmatpush1.bf16.xpose.msra.mxu0 %v1075
        %1388 = vmatprep.subr.bf16.mxu0 %v1080
        %1389 = vmatpush1.bf16.xpose.msra.mxu0 %v1079
        %1390 = vmatprep.subr.bf16.mxu0 %v1084
        %1391 = vmatpush1.bf16.xpose.msra.mxu0 %v1083
        %1392 = vmatprep.subr.bf16.mxu0 %v1088
        %1393 = vmatpush1.bf16.xpose.msra.mxu0 %v1087
        %1394 = vmatprep.subr.bf16.mxu0 %v1092
        %1395 = vmatpush1.bf16.xpose.msra.mxu0 %v1091
        %1396 = vmatprep.subr.bf16.mxu0 %v1096
        %1397 = vmatpush1.bf16.xpose.msra.mxu0 %v1095
        %1398 = vmatprep.subr.bf16.mxu0 %v1100
        %1399 = vmatpush1.bf16.xpose.msra.mxu0 %v1099
        %1400 = vmatprep.subr.bf16.mxu0 %v1104
        %1401 = vmatpush1.bf16.xpose.msra.mxu0 %v1103
        %1402 = vmatprep.subr.bf16.mxu0 %v1108
        %1403 = vmatpush1.bf16.xpose.msra.mxu0 %v1107
        %1404 = vmatprep.subr.bf16.mxu0 %v1112
        %1405 = vmatpush1.bf16.xpose.msra.mxu0 %v1111
        %1406 = vmatprep.subr.bf16.mxu0 %v1116
        %1407 = vmatpush1.bf16.xpose.msra.mxu0 %v1115
        %1408 = vmatprep.subr.bf16.mxu0 %v1120
        %1409 = vmatpush1.bf16.xpose.msra.mxu0 %v1119
        %1410 = vmatprep.mubr.bf16.mxu0 %v740
        %1411 = vmatmul.mubr.bf16.gmra.mrb[0].mxu0 %v739
        %v1412 = vpop.f32.mrb[0].mxu0
        %v1413 = vadd.f32 %v1220, %v1412
        %v1414 = vpop.f32.mrb[0].mxu0
        %v1415 = vadd.f32 %v1222, %v1414
        %v1416 = vpop.f32.mrb[0].mxu0
        %v1417 = vadd.f32 %v1224, %v1416
        %v1418 = vpop.f32.mrb[0].mxu0
        %v1419 = vadd.f32 %v1226, %v1418
        %1420 = vmatprep.mubr.bf16.mxu0 %v744
        %1421 = vmatmul.mubr.bf16.gmra.mrb[0].mxu0 %v743
        %v1422 = vpop.f32.mrb[0].mxu0
        %v1423 = vadd.f32 %v1230, %v1422
        %v1424 = vpop.f32.mrb[0].mxu0
        %v1425 = vadd.f32 %v1232, %v1424
        %v1426 = vpop.f32.mrb[0].mxu0
        %v1427 = vadd.f32 %v1234, %v1426
        %v1428 = vpop.f32.mrb[0].mxu0
        %v1429 = vadd.f32 %v1236, %v1428
        %1430 = vmatprep.mubr.bf16.mxu0 %v748
        %1431 = vmatmul.mubr.bf16.gmra.mrb[0].mxu0 %v747
        %v1432 = vpop.f32.mrb[0].mxu0
        %v1433 = vadd.f32 %v1240, %v1432
        %v1434 = vpop.f32.mrb[0].mxu0
        %v1435 = vadd.f32 %v1242, %v1434
        %v1436 = vpop.f32.mrb[0].mxu0
        %v1437 = vadd.f32 %v1244, %v1436
        %v1438 = vpop.f32.mrb[0].mxu0
        %v1439 = vadd.f32 %v1246, %v1438
        %1440 = vmatprep.mubr.bf16.mxu0 %v752
        %1441 = vmatmul.mubr.bf16.gmra.mrb[0].mxu0 %v751
        %v1442 = vpop.f32.mrb[0].mxu0
        %v1443 = vadd.f32 %v1250, %v1442
        %v1444 = vpop.f32.mrb[0].mxu0
        %v1445 = vadd.f32 %v1252, %v1444
        %v1446 = vpop.f32.mrb[0].mxu0
        %v1447 = vadd.f32 %v1254, %v1446
        %v1448 = vpop.f32.mrb[0].mxu0
        %v1449 = vadd.f32 %v1256, %v1448
        %1450 = vmatprep.mubr.bf16.mxu0 %v756
        %1451 = vmatmul.mubr.bf16.gmra.mrb[0].mxu0 %v755
        %v1452 = vpop.f32.mrb[0].mxu0
        %v1453 = vadd.f32 %v1260, %v1452
        %v1454 = vpop.f32.mrb[0].mxu0
        %v1455 = vadd.f32 %v1262, %v1454
        %v1456 = vpop.f32.mrb[0].mxu0
        %v1457 = vadd.f32 %v1264, %v1456
        %v1458 = vpop.f32.mrb[0].mxu0
        %v1459 = vadd.f32 %v1266, %v1458
        %1460 = vmatprep.mubr.bf16.mxu0 %v760
        %1461 = vmatmul.mubr.bf16.gmra.mrb[0].mxu0 %v759
        %v1462 = vpop.f32.mrb[0].mxu0
        %v1463 = vadd.f32 %v1270, %v1462
        %v1464 = vpop.f32.mrb[0].mxu0
        %v1465 = vadd.f32 %v1272, %v1464
        %v1466 = vpop.f32.mrb[0].mxu0
        %v1467 = vadd.f32 %v1274, %v1466
        %v1468 = vpop.f32.mrb[0].mxu0
        %v1469 = vadd.f32 %v1276, %v1468
        %1470 = vmatprep.mubr.bf16.mxu0 %v764
        %1471 = vmatmul.mubr.bf16.gmra.mrb[0].mxu0 %v763
        %v1472 = vpop.f32.mrb[0].mxu0
        %v1473 = vadd.f32 %v1280, %v1472
        %v1474 = vpop.f32.mrb[0].mxu0
        %v1475 = vadd.f32 %v1282, %v1474
        %v1476 = vpop.f32.mrb[0].mxu0
        %v1477 = vadd.f32 %v1284, %v1476
        %v1478 = vpop.f32.mrb[0].mxu0
        %v1479 = vadd.f32 %v1286, %v1478
        %1480 = vmatprep.mubr.bf16.mxu0 %v768
        %1481 = vmatmul.mubr.bf16.gmra.mrb[0].mxu0 %v767
        %v1482 = vpop.f32.mrb[0].mxu0
        %v1483 = vadd.f32 %v1290, %v1482
        %v1484 = vpop.f32.mrb[0].mxu0
        %v1485 = vadd.f32 %v1292, %v1484
        %v1486 = vpop.f32.mrb[0].mxu0
        %v1487 = vadd.f32 %v1294, %v1486
        %v1488 = vpop.f32.mrb[0].mxu0
        %v1489 = vadd.f32 %v1296, %v1488
        %1490 = vmatprep.mubr.bf16.mxu0 %v772
        %1491 = vmatmul.mubr.bf16.gmra.mrb[0].mxu0 %v771
        %v1492 = vpop.f32.mrb[0].mxu0
        %v1493 = vadd.f32 %v1300, %v1492
        %v1494 = vpop.f32.mrb[0].mxu0
        %v1495 = vadd.f32 %v1302, %v1494
        %v1496 = vpop.f32.mrb[0].mxu0
        %v1497 = vadd.f32 %v1304, %v1496
        %v1498 = vpop.f32.mrb[0].mxu0
        %v1499 = vadd.f32 %v1306, %v1498
        %1500 = vmatprep.mubr.bf16.mxu0 %v776
        %1501 = vmatmul.mubr.bf16.gmra.mrb[0].mxu0 %v775
        %v1502 = vpop.f32.mrb[0].mxu0
        %v1503 = vadd.f32 %v1310, %v1502
        %v1504 = vpop.f32.mrb[0].mxu0
        %v1505 = vadd.f32 %v1312, %v1504
        %v1506 = vpop.f32.mrb[0].mxu0
        %v1507 = vadd.f32 %v1314, %v1506
        %v1508 = vpop.f32.mrb[0].mxu0
        %v1509 = vadd.f32 %v1316, %v1508
        %1510 = vmatprep.mubr.bf16.mxu0 %v780
        %1511 = vmatmul.mubr.bf16.gmra.mrb[0].mxu0 %v779
        %v1512 = vpop.f32.mrb[0].mxu0
        %v1513 = vadd.f32 %v1320, %v1512
        %v1514 = vpop.f32.mrb[0].mxu0
        %v1515 = vadd.f32 %v1322, %v1514
        %v1516 = vpop.f32.mrb[0].mxu0
        %v1517 = vadd.f32 %v1324, %v1516
        %v1518 = vpop.f32.mrb[0].mxu0
        %v1519 = vadd.f32 %v1326, %v1518
        %1520 = vmatprep.mubr.bf16.mxu0 %v784
        %1521 = vmatmul.mubr.bf16.gmra.mrb[0].mxu0 %v783
        %v1522 = vpop.f32.mrb[0].mxu0
        %v1523 = vadd.f32 %v1330, %v1522
        %v1524 = vpop.f32.mrb[0].mxu0
        %v1525 = vadd.f32 %v1332, %v1524
        %v1526 = vpop.f32.mrb[0].mxu0
        %v1527 = vadd.f32 %v1334, %v1526
        %v1528 = vpop.f32.mrb[0].mxu0
        %v1529 = vadd.f32 %v1336, %v1528
        %1530 = vmatprep.mubr.bf16.mxu0 %v788
        %1531 = vmatmul.mubr.bf16.gmra.mrb[0].mxu0 %v787
        %v1532 = vpop.f32.mrb[0].mxu0
        %v1533 = vadd.f32 %v1340, %v1532
        %v1534 = vpop.f32.mrb[0].mxu0
        %v1535 = vadd.f32 %v1342, %v1534
        %v1536 = vpop.f32.mrb[0].mxu0
        %v1537 = vadd.f32 %v1344, %v1536
        %v1538 = vpop.f32.mrb[0].mxu0
        %v1539 = vadd.f32 %v1346, %v1538
        %1540 = vmatprep.mubr.bf16.mxu0 %v792
        %1541 = vmatmul.mubr.bf16.gmra.mrb[0].mxu0 %v791
        %v1542 = vpop.f32.mrb[0].mxu0
        %v1543 = vadd.f32 %v1350, %v1542
        %v1544 = vpop.f32.mrb[0].mxu0
        %v1545 = vadd.f32 %v1352, %v1544
        %v1546 = vpop.f32.mrb[0].mxu0
        %v1547 = vadd.f32 %v1354, %v1546
        %v1548 = vpop.f32.mrb[0].mxu0
        %v1549 = vadd.f32 %v1356, %v1548
        %1550 = vmatprep.mubr.bf16.mxu0 %v796
        %1551 = vmatmul.mubr.bf16.gmra.mrb[0].mxu0 %v795
        %v1552 = vpop.f32.mrb[0].mxu0
        %v1553 = vadd.f32 %v1360, %v1552
        %v1554 = vpop.f32.mrb[0].mxu0
        %v1555 = vadd.f32 %v1362, %v1554
        %v1556 = vpop.f32.mrb[0].mxu0
        %v1557 = vadd.f32 %v1364, %v1556
        %v1558 = vpop.f32.mrb[0].mxu0
        %v1559 = vadd.f32 %v1366, %v1558
        %1560 = vmatprep.mubr.bf16.mxu0 %v800
        %1561 = vmatmul.mubr.bf16.gmra.mrb[0].mxu0 %v799
        %v1562 = vpop.f32.mrb[0].mxu0
        %v1563 = vadd.f32 %v1370, %v1562
        %v1564 = vpop.f32.mrb[0].mxu0
        %v1565 = vadd.f32 %v1372, %v1564
        %v1566 = vpop.f32.mrb[0].mxu0
        %v1567 = vadd.f32 %v1374, %v1566
        %v1568 = vpop.f32.mrb[0].mxu0
        %v1569 = vadd.f32 %v1376, %v1568
        %1570 = vdwg.mxu0
        %v1571 = vadd.f32 %v353, %v1413
        %v1572 = vadd.f32 %v354, %v1415
        %v1573 = vadd.f32 %v355, %v1417
        %v1574 = vadd.f32 %v356, %v1419
        %v1575 = vadd.f32 %v357, %v1423
        %v1576 = vadd.f32 %v358, %v1425
        %v1577 = vadd.f32 %v359, %v1427
        %v1578 = vadd.f32 %v360, %v1429
        %v1579 = vadd.f32 %v361, %v1433
        %v1580 = vadd.f32 %v362, %v1435
        %v1581 = vadd.f32 %v363, %v1437
        %v1582 = vadd.f32 %v364, %v1439
        %v1583 = vadd.f32 %v365, %v1443
        %v1584 = vadd.f32 %v366, %v1445
        %v1585 = vadd.f32 %v367, %v1447
        %v1586 = vadd.f32 %v368, %v1449
        %v1587 = vadd.f32 %v369, %v1453
        %v1588 = vadd.f32 %v370, %v1455
        %v1589 = vadd.f32 %v371, %v1457
        %v1590 = vadd.f32 %v372, %v1459
        %v1591 = vadd.f32 %v373, %v1463
        %v1592 = vadd.f32 %v374, %v1465
        %v1593 = vadd.f32 %v375, %v1467
        %v1594 = vadd.f32 %v376, %v1469
        %v1595 = vadd.f32 %v377, %v1473
        %v1596 = vadd.f32 %v378, %v1475
        %v1597 = vadd.f32 %v379, %v1477
        %v1598 = vadd.f32 %v380, %v1479
        %v1599 = vadd.f32 %v381, %v1483
        %v1600 = vadd.f32 %v382, %v1485
        %v1601 = vadd.f32 %v383, %v1487
        %v1602 = vadd.f32 %v384, %v1489
        %v1603 = vadd.f32 %v385, %v1493
        %v1604 = vadd.f32 %v386, %v1495
        %v1605 = vadd.f32 %v387, %v1497
        %v1606 = vadd.f32 %v388, %v1499
        %v1607 = vadd.f32 %v389, %v1503
        %v1608 = vadd.f32 %v390, %v1505
        %v1609 = vadd.f32 %v391, %v1507
        %v1610 = vadd.f32 %v392, %v1509
        %v1611 = vadd.f32 %v393, %v1513
        %v1612 = vadd.f32 %v394, %v1515
        %v1613 = vadd.f32 %v395, %v1517
        %v1614 = vadd.f32 %v396, %v1519
        %v1615 = vadd.f32 %v397, %v1523
        %v1616 = vadd.f32 %v398, %v1525
        %v1617 = vadd.f32 %v399, %v1527
        %v1618 = vadd.f32 %v400, %v1529
        %v1619 = vadd.f32 %v401, %v1533
        %v1620 = vadd.f32 %v402, %v1535
        %v1621 = vadd.f32 %v403, %v1537
        %v1622 = vadd.f32 %v404, %v1539
        %v1623 = vadd.f32 %v405, %v1543
        %v1624 = vadd.f32 %v406, %v1545
        %v1625 = vadd.f32 %v407, %v1547
        %v1626 = vadd.f32 %v408, %v1549
        %v1627 = vadd.f32 %v409, %v1553
        %v1628 = vadd.f32 %v410, %v1555
        %v1629 = vadd.f32 %v411, %v1557
        %v1630 = vadd.f32 %v412, %v1559
        %v1631 = vadd.f32 %v413, %v1563
        %v1632 = vadd.f32 %v414, %v1565
        %v1633 = vadd.f32 %v415, %v1567
        %v1634 = vadd.f32 %v416, %v1569
        %1635 = vst [vmem:[#allocation2] sm:$0xff] %v1571
        %1636 = vst [vmem:[#allocation2 + $0x8] sm:$0xff] %v1572
        %1637 = vst [vmem:[#allocation2 + $0x10] sm:$0xff] %v1573
        %1638 = vst [vmem:[#allocation2 + $0x18] sm:$0xff] %v1574
        %1639 = vst [vmem:[#allocation2 + $0x20] sm:$0xff] %v1575
        %1640 = vst [vmem:[#allocation2 + $0x28] sm:$0xff] %v1576
        %1641 = vst [vmem:[#allocation2 + $0x30] sm:$0xff] %v1577
        %1642 = vst [vmem:[#allocation2 + $0x38] sm:$0xff] %v1578
        %1643 = vst [vmem:[#allocation2 + $0x40] sm:$0xff] %v1579
        %1644 = vst [vmem:[#allocation2 + $0x48] sm:$0xff] %v1580
        %1645 = vst [vmem:[#allocation2 + $0x50] sm:$0xff] %v1581
        %1646 = vst [vmem:[#allocation2 + $0x58] sm:$0xff] %v1582
        %1647 = vst [vmem:[#allocation2 + $0x60] sm:$0xff] %v1583
        %1648 = vst [vmem:[#allocation2 + $0x68] sm:$0xff] %v1584
        %1649 = vst [vmem:[#allocation2 + $0x70] sm:$0xff] %v1585
        %1650 = vst [vmem:[#allocation2 + $0x78] sm:$0xff] %v1586
        %1651 = vst [vmem:[#allocation2 + $0x80] sm:$0xff] %v1587
        %1652 = vst [vmem:[#allocation2 + $0x88] sm:$0xff] %v1588
        %1653 = vst [vmem:[#allocation2 + $0x90] sm:$0xff] %v1589
        %1654 = vst [vmem:[#allocation2 + $0x98] sm:$0xff] %v1590
        %1655 = vst [vmem:[#allocation2 + $0xa0] sm:$0xff] %v1591
        %1656 = vst [vmem:[#allocation2 + $0xa8] sm:$0xff] %v1592
        %1657 = vst [vmem:[#allocation2 + $0xb0] sm:$0xff] %v1593
        %1658 = vst [vmem:[#allocation2 + $0xb8] sm:$0xff] %v1594
        %1659 = vst [vmem:[#allocation2 + $0xc0] sm:$0xff] %v1595
        %1660 = vst [vmem:[#allocation2 + $0xc8] sm:$0xff] %v1596
        %1661 = vst [vmem:[#allocation2 + $0xd0] sm:$0xff] %v1597
        %1662 = vst [vmem:[#allocation2 + $0xd8] sm:$0xff] %v1598
        %1663 = vst [vmem:[#allocation2 + $0xe0] sm:$0xff] %v1599
        %1664 = vst [vmem:[#allocation2 + $0xe8] sm:$0xff] %v1600
        %1665 = vst [vmem:[#allocation2 + $0xf0] sm:$0xff] %v1601
        %1666 = vst [vmem:[#allocation2 + $0xf8] sm:$0xff] %v1602
        %1667 = vst [vmem:[#allocation2 + $0x100] sm:$0xff] %v1603
        %1668 = vst [vmem:[#allocation2 + $0x108] sm:$0xff] %v1604
        %1669 = vst [vmem:[#allocation2 + $0x110] sm:$0xff] %v1605
        %1670 = vst [vmem:[#allocation2 + $0x118] sm:$0xff] %v1606
        %1671 = vst [vmem:[#allocation2 + $0x120] sm:$0xff] %v1607
        %1672 = vst [vmem:[#allocation2 + $0x128] sm:$0xff] %v1608
        %1673 = vst [vmem:[#allocation2 + $0x130] sm:$0xff] %v1609
        %1674 = vst [vmem:[#allocation2 + $0x138] sm:$0xff] %v1610
        %1675 = vst [vmem:[#allocation2 + $0x140] sm:$0xff] %v1611
        %1676 = vst [vmem:[#allocation2 + $0x148] sm:$0xff] %v1612
        %1677 = vst [vmem:[#allocation2 + $0x150] sm:$0xff] %v1613
        %1678 = vst [vmem:[#allocation2 + $0x158] sm:$0xff] %v1614
        %1679 = vst [vmem:[#allocation2 + $0x160] sm:$0xff] %v1615
        %1680 = vst [vmem:[#allocation2 + $0x168] sm:$0xff] %v1616
        %1681 = vst [vmem:[#allocation2 + $0x170] sm:$0xff] %v1617
        %1682 = vst [vmem:[#allocation2 + $0x178] sm:$0xff] %v1618
        %1683 = vst [vmem:[#allocation2 + $0x180] sm:$0xff] %v1619
        %1684 = vst [vmem:[#allocation2 + $0x188] sm:$0xff] %v1620
        %1685 = vst [vmem:[#allocation2 + $0x190] sm:$0xff] %v1621
        %1686 = vst [vmem:[#allocation2 + $0x198] sm:$0xff] %v1622
        %1687 = vst [vmem:[#allocation2 + $0x1a0] sm:$0xff] %v1623
        %1688 = vst [vmem:[#allocation2 + $0x1a8] sm:$0xff] %v1624
        %1689 = vst [vmem:[#allocation2 + $0x1b0] sm:$0xff] %v1625
        %1690 = vst [vmem:[#allocation2 + $0x1b8] sm:$0xff] %v1626
        %1691 = vst [vmem:[#allocation2 + $0x1c0] sm:$0xff] %v1627
        %1692 = vst [vmem:[#allocation2 + $0x1c8] sm:$0xff] %v1628
        %1693 = vst [vmem:[#allocation2 + $0x1d0] sm:$0xff] %v1629
        %1694 = vst [vmem:[#allocation2 + $0x1d8] sm:$0xff] %v1630
        %1695 = vst [vmem:[#allocation2 + $0x1e0] sm:$0xff] %v1631
        %1696 = vst [vmem:[#allocation2 + $0x1e8] sm:$0xff] %v1632
        %1697 = vst [vmem:[#allocation2 + $0x1f0] sm:$0xff] %v1633
        %1698 = vst [vmem:[#allocation2 + $0x1f8] sm:$0xff] %v1634
        %p1699 = scmp.eq.s32.totalorder %s30, 1
        // Predicated region
        $region45: #{tpu_custom_call.1} parent=31 // pred_check
          %p1700 = pneg %p1699
        $region46: #{tpu_custom_call.1} parent=31 // pred_check_branch
          %1702 = sbr.rel (%p1700) target = $region48
        $region47: #{tpu_custom_call.1} parent=31 // pred_region
          %v1703 = vld [vmem:[#allocation2] sm:$0xff]
          %v1704 = vld [vmem:[#allocation2 + $0x8] sm:$0xff]
          %v1705 = vld [vmem:[#allocation2 + $0x10] sm:$0xff]
          %v1706 = vld [vmem:[#allocation2 + $0x18] sm:$0xff]
          %v1707 = vld [vmem:[#allocation2 + $0x20] sm:$0xff]
          %v1708 = vld [vmem:[#allocation2 + $0x28] sm:$0xff]
          %v1709 = vld [vmem:[#allocation2 + $0x30] sm:$0xff]
          %v1710 = vld [vmem:[#allocation2 + $0x38] sm:$0xff]
          %v1711 = vld [vmem:[#allocation2 + $0x40] sm:$0xff]
          %v1712 = vld [vmem:[#allocation2 + $0x48] sm:$0xff]
          %v1713 = vld [vmem:[#allocation2 + $0x50] sm:$0xff]
          %v1714 = vld [vmem:[#allocation2 + $0x58] sm:$0xff]
          %v1715 = vld [vmem:[#allocation2 + $0x60] sm:$0xff]
          %v1716 = vld [vmem:[#allocation2 + $0x68] sm:$0xff]
          %v1717 = vld [vmem:[#allocation2 + $0x70] sm:$0xff]
          %v1718 = vld [vmem:[#allocation2 + $0x78] sm:$0xff]
          %v1719 = vld [vmem:[#allocation2 + $0x80] sm:$0xff]
          %v1720 = vld [vmem:[#allocation2 + $0x88] sm:$0xff]
          %v1721 = vld [vmem:[#allocation2 + $0x90] sm:$0xff]
          %v1722 = vld [vmem:[#allocation2 + $0x98] sm:$0xff]
          %v1723 = vld [vmem:[#allocation2 + $0xa0] sm:$0xff]
          %v1724 = vld [vmem:[#allocation2 + $0xa8] sm:$0xff]
          %v1725 = vld [vmem:[#allocation2 + $0xb0] sm:$0xff]
          %v1726 = vld [vmem:[#allocation2 + $0xb8] sm:$0xff]
          %v1727 = vld [vmem:[#allocation2 + $0xc0] sm:$0xff]
          %v1728 = vld [vmem:[#allocation2 + $0xc8] sm:$0xff]
          %v1729 = vld [vmem:[#allocation2 + $0xd0] sm:$0xff]
          %v1730 = vld [vmem:[#allocation2 + $0xd8] sm:$0xff]
          %v1731 = vld [vmem:[#allocation2 + $0xe0] sm:$0xff]
          %v1732 = vld [vmem:[#allocation2 + $0xe8] sm:$0xff]
          %v1733 = vld [vmem:[#allocation2 + $0xf0] sm:$0xff]
          %v1734 = vld [vmem:[#allocation2 + $0xf8] sm:$0xff]
          %v1735 = vld [vmem:[#allocation2 + $0x100] sm:$0xff]
          %v1736 = vld [vmem:[#allocation2 + $0x108] sm:$0xff]
          %v1737 = vld [vmem:[#allocation2 + $0x110] sm:$0xff]
          %v1738 = vld [vmem:[#allocation2 + $0x118] sm:$0xff]
          %v1739 = vld [vmem:[#allocation2 + $0x120] sm:$0xff]
          %v1740 = vld [vmem:[#allocation2 + $0x128] sm:$0xff]
          %v1741 = vld [vmem:[#allocation2 + $0x130] sm:$0xff]
          %v1742 = vld [vmem:[#allocation2 + $0x138] sm:$0xff]
          %v1743 = vld [vmem:[#allocation2 + $0x140] sm:$0xff]
          %v1744 = vld [vmem:[#allocation2 + $0x148] sm:$0xff]
          %v1745 = vld [vmem:[#allocation2 + $0x150] sm:$0xff]
          %v1746 = vld [vmem:[#allocation2 + $0x158] sm:$0xff]
          %v1747 = vld [vmem:[#allocation2 + $0x160] sm:$0xff]
          %v1748 = vld [vmem:[#allocation2 + $0x168] sm:$0xff]
          %v1749 = vld [vmem:[#allocation2 + $0x170] sm:$0xff]
          %v1750 = vld [vmem:[#allocation2 + $0x178] sm:$0xff]
          %v1751 = vld [vmem:[#allocation2 + $0x180] sm:$0xff]
          %v1752 = vld [vmem:[#allocation2 + $0x188] sm:$0xff]
          %v1753 = vld [vmem:[#allocation2 + $0x190] sm:$0xff]
          %v1754 = vld [vmem:[#allocation2 + $0x198] sm:$0xff]
          %v1755 = vld [vmem:[#allocation2 + $0x1a0] sm:$0xff]
          %v1756 = vld [vmem:[#allocation2 + $0x1a8] sm:$0xff]
          %v1757 = vld [vmem:[#allocation2 + $0x1b0] sm:$0xff]
          %v1758 = vld [vmem:[#allocation2 + $0x1b8] sm:$0xff]
          %v1759 = vld [vmem:[#allocation2 + $0x1c0] sm:$0xff]
          %v1760 = vld [vmem:[#allocation2 + $0x1c8] sm:$0xff]
          %v1761 = vld [vmem:[#allocation2 + $0x1d0] sm:$0xff]
          %v1762 = vld [vmem:[#allocation2 + $0x1d8] sm:$0xff]
          %v1763 = vld [vmem:[#allocation2 + $0x1e0] sm:$0xff]
          %v1764 = vld [vmem:[#allocation2 + $0x1e8] sm:$0xff]
          %v1765 = vld [vmem:[#allocation2 + $0x1f0] sm:$0xff]
          %v1766 = vld [vmem:[#allocation2 + $0x1f8] sm:$0xff]
          %v1767 = vld [vmem:[%s281] sm:$0x3]
          %v1769 = vlaneseq
          %v1770 = vshrl.u32 %v1769, 7
          %v1771 = vsub.s32 0, %v1770
          %v1772 = vrot.slane %v1767, %v1771
          %v1773 = vlaneseq
          %v1774 = vshrl.u32 %v1773, 7
          %v1775 = vsub.s32 1, %v1774
          %v1776 = vrot.slane %v1767, %v1775
          %v1779 = vadd.f32 %v1703, %v1772
          %v1780 = vadd.f32 %v1704, %v1776
          %v1781 = vadd.f32 %v1705, %v1772
          %v1782 = vadd.f32 %v1706, %v1776
          %v1783 = vadd.f32 %v1707, %v1772
          %v1784 = vadd.f32 %v1708, %v1776
          %v1785 = vadd.f32 %v1709, %v1772
          %v1786 = vadd.f32 %v1710, %v1776
          %v1787 = vadd.f32 %v1711, %v1772
          %v1788 = vadd.f32 %v1712, %v1776
          %v1789 = vadd.f32 %v1713, %v1772
          %v1790 = vadd.f32 %v1714, %v1776
          %v1791 = vadd.f32 %v1715, %v1772
          %v1792 = vadd.f32 %v1716, %v1776
          %v1793 = vadd.f32 %v1717, %v1772
          %v1794 = vadd.f32 %v1718, %v1776
          %v1795 = vadd.f32 %v1719, %v1772
          %v1796 = vadd.f32 %v1720, %v1776
          %v1797 = vadd.f32 %v1721, %v1772
          %v1798 = vadd.f32 %v1722, %v1776
          %v1799 = vadd.f32 %v1723, %v1772
          %v1800 = vadd.f32 %v1724, %v1776
          %v1801 = vadd.f32 %v1725, %v1772
          %v1802 = vadd.f32 %v1726, %v1776
          %v1803 = vadd.f32 %v1727, %v1772
          %v1804 = vadd.f32 %v1728, %v1776
          %v1805 = vadd.f32 %v1729, %v1772
          %v1806 = vadd.f32 %v1730, %v1776
          %v1807 = vadd.f32 %v1731, %v1772
          %v1808 = vadd.f32 %v1732, %v1776
          %v1809 = vadd.f32 %v1733, %v1772
          %v1810 = vadd.f32 %v1734, %v1776
          %v1811 = vadd.f32 %v1735, %v1772
          %v1812 = vadd.f32 %v1736, %v1776
          %v1813 = vadd.f32 %v1737, %v1772
          %v1814 = vadd.f32 %v1738, %v1776
          %v1815 = vadd.f32 %v1739, %v1772
          %v1816 = vadd.f32 %v1740, %v1776
          %v1817 = vadd.f32 %v1741, %v1772
          %v1818 = vadd.f32 %v1742, %v1776
          %v1819 = vadd.f32 %v1743, %v1772
          %v1820 = vadd.f32 %v1744, %v1776
          %v1821 = vadd.f32 %v1745, %v1772
          %v1822 = vadd.f32 %v1746, %v1776
          %v1823 = vadd.f32 %v1747, %v1772
          %v1824 = vadd.f32 %v1748, %v1776
          %v1825 = vadd.f32 %v1749, %v1772
          %v1826 = vadd.f32 %v1750, %v1776
          %v1827 = vadd.f32 %v1751, %v1772
          %v1828 = vadd.f32 %v1752, %v1776
          %v1829 = vadd.f32 %v1753, %v1772
          %v1830 = vadd.f32 %v1754, %v1776
          %v1831 = vadd.f32 %v1755, %v1772
          %v1832 = vadd.f32 %v1756, %v1776
          %v1833 = vadd.f32 %v1757, %v1772
          %v1834 = vadd.f32 %v1758, %v1776
          %v1835 = vadd.f32 %v1759, %v1772
          %v1836 = vadd.f32 %v1760, %v1776
          %v1837 = vadd.f32 %v1761, %v1772
          %v1838 = vadd.f32 %v1762, %v1776
          %v1839 = vadd.f32 %v1763, %v1772
          %v1840 = vadd.f32 %v1764, %v1776
          %v1841 = vadd.f32 %v1765, %v1772
          %v1842 = vadd.f32 %v1766, %v1776
          %1843 = vst [vmem:[%s273] sm:$0xff] %v1779
          %1844 = vst [vmem:[%s273 + $0x8] sm:$0xff] %v1780
          %1845 = vst [vmem:[%s273 + $0x10] sm:$0xff] %v1781
          %1846 = vst [vmem:[%s273 + $0x18] sm:$0xff] %v1782
          %1847 = vst [vmem:[%s273 + $0x20] sm:$0xff] %v1783
          %1848 = vst [vmem:[%s273 + $0x28] sm:$0xff] %v1784
          %1849 = vst [vmem:[%s273 + $0x30] sm:$0xff] %v1785
          %1850 = vst [vmem:[%s273 + $0x38] sm:$0xff] %v1786
          %1851 = vst [vmem:[%s273 + $0x40] sm:$0xff] %v1787
          %1852 = vst [vmem:[%s273 + $0x48] sm:$0xff] %v1788
          %1853 = vst [vmem:[%s273 + $0x50] sm:$0xff] %v1789
          %1854 = vst [vmem:[%s273 + $0x58] sm:$0xff] %v1790
          %1855 = vst [vmem:[%s273 + $0x60] sm:$0xff] %v1791
          %1856 = vst [vmem:[%s273 + $0x68] sm:$0xff] %v1792
          %1857 = vst [vmem:[%s273 + $0x70] sm:$0xff] %v1793
          %1858 = vst [vmem:[%s273 + $0x78] sm:$0xff] %v1794
          %1859 = vst [vmem:[%s273 + $0x80] sm:$0xff] %v1795
          %1860 = vst [vmem:[%s273 + $0x88] sm:$0xff] %v1796
          %1861 = vst [vmem:[%s273 + $0x90] sm:$0xff] %v1797
          %1862 = vst [vmem:[%s273 + $0x98] sm:$0xff] %v1798
          %1863 = vst [vmem:[%s273 + $0xa0] sm:$0xff] %v1799
          %1864 = vst [vmem:[%s273 + $0xa8] sm:$0xff] %v1800
          %1865 = vst [vmem:[%s273 + $0xb0] sm:$0xff] %v1801
          %1866 = vst [vmem:[%s273 + $0xb8] sm:$0xff] %v1802
          %1867 = vst [vmem:[%s273 + $0xc0] sm:$0xff] %v1803
          %1868 = vst [vmem:[%s273 + $0xc8] sm:$0xff] %v1804
          %1869 = vst [vmem:[%s273 + $0xd0] sm:$0xff] %v1805
          %1870 = vst [vmem:[%s273 + $0xd8] sm:$0xff] %v1806
          %1871 = vst [vmem:[%s273 + $0xe0] sm:$0xff] %v1807
          %1872 = vst [vmem:[%s273 + $0xe8] sm:$0xff] %v1808
          %1873 = vst [vmem:[%s273 + $0xf0] sm:$0xff] %v1809
          %1874 = vst [vmem:[%s273 + $0xf8] sm:$0xff] %v1810
          %1875 = vst [vmem:[%s273 + $0x100] sm:$0xff] %v1811
          %1876 = vst [vmem:[%s273 + $0x108] sm:$0xff] %v1812
          %1877 = vst [vmem:[%s273 + $0x110] sm:$0xff] %v1813
          %1878 = vst [vmem:[%s273 + $0x118] sm:$0xff] %v1814
          %1879 = vst [vmem:[%s273 + $0x120] sm:$0xff] %v1815
          %1880 = vst [vmem:[%s273 + $0x128] sm:$0xff] %v1816
          %1881 = vst [vmem:[%s273 + $0x130] sm:$0xff] %v1817
          %1882 = vst [vmem:[%s273 + $0x138] sm:$0xff] %v1818
          %1883 = vst [vmem:[%s273 + $0x140] sm:$0xff] %v1819
          %1884 = vst [vmem:[%s273 + $0x148] sm:$0xff] %v1820
          %1885 = vst [vmem:[%s273 + $0x150] sm:$0xff] %v1821
          %1886 = vst [vmem:[%s273 + $0x158] sm:$0xff] %v1822
          %1887 = vst [vmem:[%s273 + $0x160] sm:$0xff] %v1823
          %1888 = vst [vmem:[%s273 + $0x168] sm:$0xff] %v1824
          %1889 = vst [vmem:[%s273 + $0x170] sm:$0xff] %v1825
          %1890 = vst [vmem:[%s273 + $0x178] sm:$0xff] %v1826
          %1891 = vst [vmem:[%s273 + $0x180] sm:$0xff] %v1827
          %1892 = vst [vmem:[%s273 + $0x188] sm:$0xff] %v1828
          %1893 = vst [vmem:[%s273 + $0x190] sm:$0xff] %v1829
          %1894 = vst [vmem:[%s273 + $0x198] sm:$0xff] %v1830
          %1895 = vst [vmem:[%s273 + $0x1a0] sm:$0xff] %v1831
          %1896 = vst [vmem:[%s273 + $0x1a8] sm:$0xff] %v1832
          %1897 = vst [vmem:[%s273 + $0x1b0] sm:$0xff] %v1833
          %1898 = vst [vmem:[%s273 + $0x1b8] sm:$0xff] %v1834
          %1899 = vst [vmem:[%s273 + $0x1c0] sm:$0xff] %v1835
          %1900 = vst [vmem:[%s273 + $0x1c8] sm:$0xff] %v1836
          %1901 = vst [vmem:[%s273 + $0x1d0] sm:$0xff] %v1837
          %1902 = vst [vmem:[%s273 + $0x1d8] sm:$0xff] %v1838
          %1903 = vst [vmem:[%s273 + $0x1e0] sm:$0xff] %v1839
          %1904 = vst [vmem:[%s273 + $0x1e8] sm:$0xff] %v1840
          %1905 = vst [vmem:[%s273 + $0x1f0] sm:$0xff] %v1841
          %1906 = vst [vmem:[%s273 + $0x1f8] sm:$0xff] %v1842
        $region48: #{tpu_custom_call.1} parent=31 // pred_fallthru
          _
        %s1907 = sand.u32 %s134, 1
        %s1908 = scalar_lea.sflag [#allocation5], %s1907
        %s1909 = sand.u32 %s134, 1
        %s1910 = smul.addr %s1909, 512
        %s1911 = scalar_lea.vmem [#allocation8], %s1910
        // Predicated region
        $region49: #{tpu_custom_call.1} parent=31 // pred_check
          %p1912 = pneg %p144
        $region50: #{tpu_custom_call.1} parent=31 // pred_check_branch
          %1914 = sbr.rel (%p1912) target = $region52
        $region51: #{tpu_custom_call.1} parent=31 // pred_region
          %s1915 = smul.u32 32, %s28
          %s1916 = smul.u32 2, %s29
          %s1918 = ssub.s32 8192, 8192
          %1919 = vsyncadd %s1908, %s1918
          %s1920 = smul.addr %s1915, 4
          %s1921 = sadd.s32 %s1916, %s1920
          %s1922 = smul.addr %s1921, 128
          %s1923 = scalar_lea.hbm %s3, %s1922
          %s1924 = sshll.u32 %s1911, 4
          %s1925 = int_to_ptr.vmem [resolvable:$true] %s1924
          %1930 = dma.vmem_to_hbm [thread:$0]  %s1925, 8192, %s1923, %s1908, 256, 512, 16
        $region52: #{tpu_custom_call.1} parent=31 // pred_fallthru
          _
      $region32: #{tpu_custom_call.1} parent=5 // pred_fallthru
        _
      %p1931 = scmp.le.s32.totalorder 2, %s18
      // Predicated region
      $region53: #{tpu_custom_call.1} parent=5 // pred_check
        %p1932 = pneg %p1931
      $region54: #{tpu_custom_call.1} parent=5 // pred_check_branch
        %1934 = sbr.rel (%p1932) target = $region56
      $region55: #{tpu_custom_call.1} parent=5 // pred_region
        %s1935 = ssub.s32 %s18, 2
        // Predicated region
        $region57: #{tpu_custom_call.1} parent=55 // pred_check
          %p1936 = pneg %p150
        $region58: #{tpu_custom_call.1} parent=55 // pred_check_branch
          %1938 = sbr.rel (%p1936) target = $region60
        $region59: #{tpu_custom_call.1} parent=55 // pred_region
          %s1939 = sand.u32 %s135, 1
          %s1940 = scalar_lea.sflag [#allocation5], %s1939
          %s1941 = sand.u32 %s135, 1
          %s1942 = smul.addr %s1941, 512
          %s1943 = scalar_lea.vmem [#allocation8], %s1942
          %1944 = dma.done %s1940, 8192
        $region60: #{tpu_custom_call.1} parent=55 // pred_fallthru
          _
      $region56: #{tpu_custom_call.1} parent=5 // pred_fallthru
        _
    $region6: #{tpu_custom_call.1} parent=1 // loop_footer
      %s22 = sadd.s32 1, %s18
    $region7: #{tpu_custom_call.1} parent=1 // loop_footer_branch
      %17 = sbr.rel target = $region3
    $region8: #{tpu_custom_call.1} parent=1 // loop_exit
      _
    %1945 = vsyncpa [#allocation4], 1
    %s1946 = scalar_lea.sflag [#allocation4], 1
    %1947 = vsyncpa %s1946, 1
    %1948 = vsyncpa [#allocation7], 1
    %s1949 = scalar_lea.sflag [#allocation7], 1
    %1950 = vsyncpa %s1949, 1
    %1951 = vsyncpa [#allocation5], 1
    %s1952 = scalar_lea.sflag [#allocation5], 1
    %1953 = vsyncpa %s1952, 1

</llo_original>
